<compile_context>
chip_gen: v7x
topology: tpu7x:2x2x1
jax: 0.10.0
libtpu: 0.0.40
codegen_flags: <defaults>
</compile_context>

<pallas_src>
import numpy as np
import jax
import jax.numpy as jnp
from jax.experimental import pallas as pl
from jax.experimental.pallas import tpu as pltpu


_VMEM = pl.BlockSpec(memory_space=pltpu.MemorySpace.VMEM)
_VMEM_LIMIT = 32 * 1024 * 1024          # explicit scoped-VMEM limit (fits all generations)


def _round_up(x, m):
    return -(-x // m) * m


# ----------------------------- kernel 1: LSTM recurrence ------------------------------

def _make_recurrence_kernel(seq_len, batch, hidden, h_pad):
    """seq_len, batch, hidden, h_pad are Python ints (static)."""
    G4 = 4 * hidden
    use_roll = (h_pad != hidden)          # demo path (hidden < 128): h/c live on 4H lanes

    def kernel(x_ref, wih_ref, bg_ref, whh_ref, hseq_ref, gx_ref):
        # ---- hoisted input projection, bias (b_ih + b_hh) folded in: one MXU call ----
        gx_ref[...] = (jnp.dot(x_ref[...], wih_ref[...],
                               preferred_element_type=jnp.float32)
                       + bg_ref[...])                                  # (T*B, 4H) f32

        # Loop-invariant lane helpers (PyTorch gate order i|f|g|o per H-chunk).
        lane = jax.lax.broadcasted_iota(jnp.int32, (batch, G4), 1)
        g_mask = (lane >= 2 * hidden) & (lane < 3 * hidden)            # tanh (g-gate) lanes
        g_scale = jnp.where(g_mask, 2.0, 1.0).astype(jnp.float32)      # pre-scale for tanh trick

        def activations(gates):
            # Single EUP pass: sigmoid everywhere; tanh(x) = 2*sigmoid(2x) - 1 on g lanes.
            s = jax.nn.sigmoid(gates * g_scale)
            return jnp.where(g_mask, 2.0 * s - 1.0, s)

        def recur_gates(h_carry, row):
            return gx_ref[pl.ds(row, batch), :] + jnp.dot(
                h_carry.astype(jnp.bfloat16), whh_ref[...],
                preferred_element_type=jnp.float32)                    # (B, 4H) f32

        if use_roll:
            # h/c are (B, 4H); rolls (XLU, free slot) align each gate chunk with lanes [0,H).
            # Pad lanes (>= H) of h/c carry bounded garbage; this is safe ONLY because
            # rows >= H of W_hh and W_out are exactly zero (enforced in __init__).
            def step(t, carry):
                h_c, c = carry
                row = pl.multiple_of(t * batch, batch)
                act = activations(recur_gates(h_c, row))
                g_al = pltpu.roll(act, 2 * hidden, 1)                  # tanh(g)    -> [0,H)
                f_al = pltpu.roll(act, 3 * hidden, 1)                  # sigmoid(f) -> [0,H)
                o_al = pltpu.roll(act, hidden, 1)                      # sigmoid(o) -> [0,H)
                c_new = f_al * c + act * g_al                          # valid in lanes [0,H)
                h_new = o_al * jnp.tanh(c_new)
                hseq_ref[t] = h_new.astype(jnp.bfloat16)
                return h_new, c_new
            zeros = jnp.zeros((batch, G4), jnp.float32)
            carry0 = (zeros, zeros)
        else:
            # H is a multiple of 128: no padding, gate chunks are 128-lane-aligned slices.
            def step(t, carry):
                h, c = carry
                row = pl.multiple_of(t * batch, batch)
                act = activations(recur_gates(h, row))
                i_g = act[:, 0:hidden]
                f_g = act[:, hidden:2 * hidden]
                g_g = act[:, 2 * hidden:3 * hidden]
                o_g = act[:, 3 * hidden:4 * hidden]
                c_new = f_g * c + i_g * g_g
                h_new = o_g * jnp.tanh(c_new)
                hseq_ref[t] = h_new.astype(jnp.bfloat16)
                return h_new, c_new
            zeros = jnp.zeros((batch, hidden), jnp.float32)
            carry0 = (zeros, zeros)

        # Full unroll only while the recurrence is short (code size / vreg pressure).
        jax.lax.fori_loop(0, seq_len, step, carry0,
                          unroll=(True if seq_len <= 20 else 4))

    return kernel


def lstm_recurrence(x_flat, w_ih, b_gates, w_hh, *, seq_len, batch, hidden, h_pad):
    """x_flat: (T*B, E) bf16 time-major rows. Returns hseq (T, B, h_pad) bf16."""
    G4 = 4 * hidden
    TB = seq_len * batch
    kernel = _make_recurrence_kernel(seq_len, batch, hidden, h_pad)
    return pl.pallas_call(
        kernel,
        out_shape=jax.ShapeDtypeStruct((seq_len, batch, h_pad), jnp.bfloat16),
        in_specs=[_VMEM] * 4,
        out_specs=_VMEM,
        scratch_shapes=[pltpu.VMEM((TB, G4), jnp.float32)],   # gates_x (hoisted projection)
        compiler_params=pltpu.CompilerParams(vmem_limit_bytes=_VMEM_LIMIT),
    )(x_flat, w_ih, b_gates, w_hh)


# ----------------------------- kernel 2: packed vocab projection ----------------------

def _proj_kernel(h_ref, w_ref, b_ref, o_ref):
    o_ref[...] = (jnp.dot(h_ref[...], w_ref[...],
                          preferred_element_type=jnp.float32)
                  + b_ref[...])                                        # lane-dense f32 tile


def _pick_tile_v(n_rows, h_pad, v_pad, *, max_tile=2048, budget_bytes=20 * 1024 * 1024):
    """Largest V tile (multiple of 128, divisor of v_pad) whose double-buffered
    footprint fits the budget (sized for v7x's 64 MiB physical / explicit 32 MiB limit)."""
    per_lane = 2 * (h_pad * 2 + 4 + n_rows * 4)    # 2x (W_out bf16 + bias f32 + out f32) cols
    resident = 2 * n_rows * h_pad * 2              # hseq block (conservatively double-buffered)
    t = max(128, (budget_bytes - resident) // per_lane)
    t = max(128, min(int(t), max_tile, v_pad))
    t = (t // 128) * 128
    while v_pad % t:
        t -= 128
    return t


def packed_projection(hseq_packed, w_out, b_out, *, tile_v):
    """hseq_packed: (N_pad, H_pad) bf16, w_out: (H_pad, V_pad) bf16, b_out: (1, V_pad) f32."""
    n_pad, h_pad = hseq_packed.shape
    v_pad = w_out.shape[1]
    grid = (v_pad // tile_v,)
    return pl.pallas_call(
        _proj_kernel,
        out_shape=jax.ShapeDtypeStruct((n_pad, v_pad), jnp.float32),
        grid_spec=pltpu.PrefetchScalarGridSpec(
            num_scalar_prefetch=0,
            grid=grid,
            in_specs=[pl.BlockSpec((n_pad, h_pad), lambda j: (0, 0)),   # resident
                      pl.BlockSpec((h_pad, tile_v), lambda j: (0, j)),  # pipelined weights
                      pl.BlockSpec((1, tile_v), lambda j: (0, j))],
            out_specs=pl.BlockSpec((n_pad, tile_v), lambda j: (0, j)),
        ),
        compiler_params=pltpu.CompilerParams(
            dimension_semantics=("parallel",),       # megacore-shard the V axis on v7x
            vmem_limit_bytes=_VMEM_LIMIT),
    )(hseq_packed, w_out, b_out)


# ----------------------------- model --------------------------------------------------

class DecoderRNNPallas:
    """DecoderRNN(embed_size, hidden_size, vocab_size, num_layers=1) forward pass."""

    def __init__(self, key, embed_size, hidden_size, vocab_size, num_layers=1,
                 max_seq_length=20):
        # TODO(synk): num_layers > 1 (stacked LSTM) and DecoderRNN.sample() greedy decoding
        #             are not implemented; the reference forward path uses a single layer.
        assert num_layers == 1
        self.embed_size, self.hidden_size, self.vocab_size = embed_size, hidden_size, vocab_size
        self.max_seq_length = max_seq_length
        H, E, V = hidden_size, embed_size, vocab_size

        if H % 128 == 0:
            self.h_pad = H                              # aligned path: no padding at all
        else:
            assert (4 * H) % 128 == 0, "hidden_size must be a multiple of 32"
            self.h_pad = 4 * H                          # roll path: h/c on 4H lanes
        self.v_pad = _round_up(V, 128)

        k = 1.0 / np.sqrt(H)
        ks = jax.random.split(key, 7)
        self.embed_tbl = jax.random.normal(ks[0], (V, E), jnp.float32)   # nn.Embedding ~ N(0,1)
        w_ih = jax.random.uniform(ks[1], (E, 4 * H), minval=-k, maxval=k, dtype=jnp.float32)
        w_hh = jax.random.uniform(ks[2], (H, 4 * H), minval=-k, maxval=k, dtype=jnp.float32)
        b_ih = jax.random.uniform(ks[3], (1, 4 * H), minval=-k, maxval=k, dtype=jnp.float32)
        b_hh = jax.random.uniform(ks[4], (1, 4 * H), minval=-k, maxval=k, dtype=jnp.float32)
        w_out = jax.random.uniform(ks[5], (H, V), minval=-k, maxval=k, dtype=jnp.float32)
        b_out = jax.random.uniform(ks[6], (1, V), minval=-k, maxval=k, dtype=jnp.float32)

        # Kernel-side copies: bf16 MXU operands, fused f32 biases.
        self.w_ih_bf16 = w_ih.astype(jnp.bfloat16)
        self.b_gates = b_ih + b_hh
        if self.h_pad == H:
            w_hh_k = w_hh                                              # (H, 4H), no padding
        else:
            # Rows >= H MUST stay exactly zero: the kernel drops the h pad-lane mask and
            # relies on these zero rows to kill pad-lane garbage.
            w_hh_k = jnp.zeros((self.h_pad, 4 * H), jnp.float32).at[:H].set(w_hh)
        self.w_hh_bf16 = w_hh_k.astype(jnp.bfloat16)
        self.w_out_bf16 = (jnp.zeros((self.h_pad, self.v_pad), jnp.float32)
                           .at[:H, :V].set(w_out).astype(jnp.bfloat16))   # zero pad rows/cols
        self.b_out_pad = jnp.zeros((1, self.v_pad), jnp.float32).at[:, :V].set(b_out)

    @staticmethod
    def _pack_rows(lengths, batch):
        # pack_padded_sequence(batch_first=True) data order: time-major over active rows.
        lengths = np.asarray(lengths)
        rows = [t * batch + b
                for t in range(int(lengths.max()))
                for b in range(len(lengths)) if lengths[b] > t]
        return np.asarray(rows, dtype=np.int32)

    def forward(self, features, captions, lengths):
        B = features.shape[0]
        emb = self.embed_tbl[captions]                                  # (B, T, E) gather (glue)
        seq = jnp.concatenate([features[:, None, :], emb], axis=1)      # (B, T+1, E)
        T1 = seq.shape[1]
        x_flat = (jnp.transpose(seq, (1, 0, 2))                         # time-major
                  .reshape(T1 * B, self.embed_size).astype(jnp.bfloat16))

        # Serial recurrence (single TensorCore, grid-less) -> bf16 hidden-state sequence.
        hseq = lstm_recurrence(x_flat, self.w_ih_bf16, self.b_gates, self.w_hh_bf16,
                               seq_len=T1, batch=B, hidden=self.hidden_size,
                               h_pad=self.h_pad)                        # (T1, B, H_pad) bf16

        # Gather ONLY the packed rows (small array), then project them against the vocab.
        rows = self._pack_rows(lengths, B)
        n = rows.shape[0]
        n_pad = _round_up(n, 8)
        rows_pad = np.concatenate([rows, np.zeros(n_pad - n, np.int32)])
        hseq_packed = hseq.reshape(T1 * B, self.h_pad)[jnp.asarray(rows_pad)]

        tile_v = _pick_tile_v(n_pad, self.h_pad, self.v_pad)
        logits = packed_projection(hseq_packed, self.w_out_bf16, self.b_out_pad,
                                   tile_v=tile_v)                       # (n_pad, V_pad) f32
        return logits[:n, :self.vocab_size]                             # (sum(lengths), V)


# ----------------------------- pure-JAX reference (same bf16 casts) -------------------

def _reference_forward(model, features, captions, lengths):
    B = features.shape[0]
    H = model.hidden_size
    emb = model.embed_tbl[captions]
    seq = jnp.concatenate([features[:, None, :], emb], axis=1)
    T1 = seq.shape[1]
    x = jnp.transpose(seq, (1, 0, 2)).reshape(T1 * B, model.embed_size).astype(jnp.bfloat16)
    gx = (jnp.dot(x, model.w_ih_bf16, preferred_element_type=jnp.float32)
          + model.b_gates).reshape(T1, B, 4 * H)
    w_hh = model.w_hh_bf16[:H]                       # (H, 4H), valid for both layouts
    w_out = model.w_out_bf16[:H, :model.vocab_size]
    h = jnp.zeros((B, H), jnp.float32)
    c = jnp.zeros((B, H), jnp.float32)
    hs = []
    for t in range(T1):
        gates = gx[t] + jnp.dot(h.astype(jnp.bfloat16), w_hh,
                                preferred_element_type=jnp.float32)
        i_g = jax.nn.sigmoid(gates[:, 0:H])
        f_g = jax.nn.sigmoid(gates[:, H:2 * H])
        g_g = jnp.tanh(gates[:, 2 * H:3 * H])
        o_g = jax.nn.sigmoid(gates[:, 3 * H:4 * H])
        c = f_g * c + i_g * g_g
        h = o_g * jnp.tanh(c)
        hs.append(h)
    hseq = jnp.stack(hs, 0).reshape(T1 * B, H).astype(jnp.bfloat16)
    logits = (jnp.dot(hseq, w_out, preferred_element_type=jnp.float32)
              + model.b_out_pad[:, :model.vocab_size])
    return logits[model._pack_rows(lengths, B)]


# ----------------------------- main ----------------------------------------------------

if __name__ == "__main__":
    root = jax.random.PRNGKey(0)
    cases = [
        # name,                              B, T_cap, E,  H,   V
        ("H=32 roll path, single V block",   8, 7,     32, 32,  128),
        ("H=128 aligned path, V tiled (2)",  8, 7,     64, 128, 4096),
    ]
    lengths = np.array([8, 8, 7, 6, 5, 4, 3, 2], dtype=np.int32)   # sorted descending

    for idx, (name, B, T_CAP, EMBED, HIDDEN, VOCAB) in enumerate(cases):
        key = jax.random.fold_in(root, idx)
        k_feat, k_cap, k_model = jax.random.split(key, 3)
        features = jax.random.normal(k_feat, (B, EMBED), dtype=jnp.float32)
        captions = jax.random.randint(k_cap, (B, T_CAP), 0, VOCAB, dtype=jnp.int32)

        model = DecoderRNNPallas(k_model, EMBED, HIDDEN, VOCAB, num_layers=1)
        out = jax.block_until_ready(model.forward(features, captions, lengths))

        expected = (int(lengths.sum()), VOCAB)
        assert out.shape == expected, (name, out.shape, expected)
        assert bool(jnp.all(jnp.isfinite(out))), name

        ref = jax.block_until_ready(_reference_forward(model, features, captions, lengths))
        err = float(jnp.max(jnp.abs(out - ref)))
        # bf16-matmul-level accuracy (reference applies the same bf16 casts).
        assert err < 5e-2, f"{name}: mismatch vs JAX reference, max abs err {err}"

    print("KERNEL_OK")
</pallas_src>

<mosaic_0001>
module attributes {stable_mosaic.version = 11 : i64} {
  func.func @kernel(%arg0: memref<64x32xbf16, #tpu.memory_space<vmem>>, %arg1: memref<32x128xbf16, #tpu.memory_space<vmem>>, %arg2: memref<1x128xf32, #tpu.memory_space<vmem>>, %arg3: memref<128x128xbf16, #tpu.memory_space<vmem>>, %arg4: memref<8x8x128xbf16, #tpu.memory_space<vmem>>, %arg5: memref<64x128xf32, #tpu.memory_space<vmem>>) attributes {dimension_semantics = [], scalar_prefetch = 0 : i64, scratch_operands = 1 : i64, tpu.core_type = #tpu.core_type<tc>} {
    %c0 = arith.constant 0 : index
    %c0_0 = arith.constant 0 : index
    %0 = vector.load %arg0[%c0, %c0_0] : memref<64x32xbf16, #tpu.memory_space<vmem>>, vector<64x32xbf16>
    %c0_1 = arith.constant 0 : index
    %c0_2 = arith.constant 0 : index
    %1 = vector.load %arg1[%c0_1, %c0_2] : memref<32x128xbf16, #tpu.memory_space<vmem>>, vector<32x128xbf16>
    %cst = arith.constant dense<0.000000e+00> : vector<64x128xf32>
    %2 = tpu.matmul %0, %1, %cst {dimension_numbers = #tpu.dot_dimension_numbers<[1], [0], [0], [1], [0, 0, 1, 1], [], []>} : vector<64x32xbf16>, vector<32x128xbf16>, vector<64x128xf32> -> vector<64x128xf32>
    %c0_3 = arith.constant 0 : index
    %c0_4 = arith.constant 0 : index
    %3 = vector.load %arg2[%c0_3, %c0_4] : memref<1x128xf32, #tpu.memory_space<vmem>>, vector<1x128xf32>
    %4 = vector.broadcast %3 : vector<1x128xf32> to vector<64x128xf32>
    %5 = arith.addf %2, %4 : vector<64x128xf32>
    %c0_5 = arith.constant 0 : index
    %c0_6 = arith.constant 0 : index
    %6 = vector.load %arg5[%c0_5, %c0_6] : memref<64x128xf32, #tpu.memory_space<vmem>>, vector<64x128xf32>
    tpu.vector_store %arg5[%c0_5, %c0_6], %5 {strides = array<i32>} : memref<64x128xf32, #tpu.memory_space<vmem>>, vector<64x128xf32>,
    %7 = tpu.iota {dimensions = array<i32: 1>} : vector<8x128xi32>
    %c64_i32 = arith.constant 64 : i32
    %8 = vector.broadcast %c64_i32 : i32 to vector<8x128xi32>
    %9 = arith.cmpi sge, %7, %8 : vector<8x128xi32>
    %c96_i32 = arith.constant 96 : i32
    %10 = vector.broadcast %c96_i32 : i32 to vector<8x128xi32>
    %11 = arith.cmpi slt, %7, %10 : vector<8x128xi32>
    %12 = arith.andi %9, %11 : vector<8x128xi1>
    %cst_7 = arith.constant 2.000000e+00 : f32
    %cst_8 = arith.constant 1.000000e+00 : f32
    %13 = vector.broadcast %cst_7 : f32 to vector<8x128xf32>
    %14 = vector.broadcast %cst_8 : f32 to vector<8x128xf32>
    %15 = arith.select %12, %13, %14 : vector<8x128xi1>, vector<8x128xf32>
    %cst_9 = arith.constant 0.000000e+00 : f32
    %16 = vector.broadcast %cst_9 : f32 to vector<8x128xf32>
    %c0_i32 = arith.constant 0 : i32
    %c8_i32 = arith.constant 8 : i32
    %17 = arith.muli %c0_i32, %c8_i32 : i32
    %18 = tpu.assume_multiple %17, 8 : i32
    %19 = arith.index_cast %18 : i32 to index
    %c0_10 = arith.constant 0 : index
    %20 = vector.load %arg5[%19, %c0_10] : memref<64x128xf32, #tpu.memory_space<vmem>>, vector<8x128xf32>
    %21 = arith.truncf %16 : vector<8x128xf32> to vector<8x128xbf16>
    %c0_11 = arith.constant 0 : index
    %c0_12 = arith.constant 0 : index
    %22 = vector.load %arg3[%c0_11, %c0_12] : memref<128x128xbf16, #tpu.memory_space<vmem>>, vector<128x128xbf16>
    %cst_13 = arith.constant dense<0.000000e+00> : vector<8x128xf32>
    %23 = tpu.matmul %21, %22, %cst_13 {dimension_numbers = #tpu.dot_dimension_numbers<[1], [0], [0], [1], [0, 0, 1, 1], [], []>} : vector<8x128xbf16>, vector<128x128xbf16>, vector<8x128xf32> -> vector<8x128xf32>
    %24 = arith.addf %20, %23 : vector<8x128xf32>
    %25 = arith.mulf %24, %15 : vector<8x128xf32>
    %26 = arith.negf %25 : vector<8x128xf32>
    %27 = math.exp %26 : vector<8x128xf32>
    %cst_14 = arith.constant 1.000000e+00 : f32
    %28 = vector.broadcast %cst_14 : f32 to vector<8x128xf32>
    %29 = arith.addf %28, %27 : vector<8x128xf32>
    %30 = arith.divf %28, %29 : vector<8x128xf32>
    %cst_15 = arith.constant 2.000000e+00 : f32
    %31 = vector.broadcast %cst_15 : f32 to vector<8x128xf32>
    %32 = arith.mulf %31, %30 : vector<8x128xf32>
    %cst_16 = arith.constant 1.000000e+00 : f32
    %33 = vector.broadcast %cst_16 : f32 to vector<8x128xf32>
    %34 = arith.subf %32, %33 : vector<8x128xf32>
    %35 = arith.select %12, %34, %30 : vector<8x128xi1>, vector<8x128xf32>
    %c64_i32_17 = arith.constant 64 : i32
    %36 = tpu.dynamic_rotate %35 by %c64_i32_17 dim 1 : vector<8x128xf32>, i32 -> vector<8x128xf32>
    %c96_i32_18 = arith.constant 96 : i32
    %37 = tpu.dynamic_rotate %35 by %c96_i32_18 dim 1 : vector<8x128xf32>, i32 -> vector<8x128xf32>
    %c32_i32 = arith.constant 32 : i32
    %38 = tpu.dynamic_rotate %35 by %c32_i32 dim 1 : vector<8x128xf32>, i32 -> vector<8x128xf32>
    %39 = arith.mulf %37, %16 : vector<8x128xf32>
    %40 = arith.mulf %35, %36 : vector<8x128xf32>
    %41 = arith.addf %39, %40 : vector<8x128xf32>
    %42 = math.tanh %41 : vector<8x128xf32>
    %43 = arith.mulf %38, %42 : vector<8x128xf32>
    %44 = arith.truncf %43 : vector<8x128xf32> to vector<8x128xbf16>
    %45 = arith.index_cast %c0_i32 : i32 to index
    %c0_19 = arith.constant 0 : index
    %c0_20 = arith.constant 0 : index
    %46 = vector.load %arg4[%45, %c0_19, %c0_20] : memref<8x8x128xbf16, #tpu.memory_space<vmem>>, vector<1x8x128xbf16>
    %47 = vector.shape_cast %46 : vector<1x8x128xbf16> to vector<8x128xbf16>
    %48 = vector.shape_cast %44 : vector<8x128xbf16> to vector<1x8x128xbf16>
    tpu.vector_store %arg4[%45, %c0_19, %c0_20], %48 {strides = array<i32>} : memref<8x8x128xbf16, #tpu.memory_space<vmem>>, vector<1x8x128xbf16>,
    %c1_i32 = arith.constant 1 : i32
    %c8_i32_21 = arith.constant 8 : i32
    %49 = arith.muli %c1_i32, %c8_i32_21 : i32
    %50 = tpu.assume_multiple %49, 8 : i32
    %51 = arith.index_cast %50 : i32 to index
    %c0_22 = arith.constant 0 : index
    %52 = vector.load %arg5[%51, %c0_22] : memref<64x128xf32, #tpu.memory_space<vmem>>, vector<8x128xf32>
    %53 = arith.truncf %43 : vector<8x128xf32> to vector<8x128xbf16>
    %c0_23 = arith.constant 0 : index
    %c0_24 = arith.constant 0 : index
    %54 = vector.load %arg3[%c0_23, %c0_24] : memref<128x128xbf16, #tpu.memory_space<vmem>>, vector<128x128xbf16>
    %cst_25 = arith.constant dense<0.000000e+00> : vector<8x128xf32>
    %55 = tpu.matmul %53, %54, %cst_25 {dimension_numbers = #tpu.dot_dimension_numbers<[1], [0], [0], [1], [0, 0, 1, 1], [], []>} : vector<8x128xbf16>, vector<128x128xbf16>, vector<8x128xf32> -> vector<8x128xf32>
    %56 = arith.addf %52, %55 : vector<8x128xf32>
    %57 = arith.mulf %56, %15 : vector<8x128xf32>
    %58 = arith.negf %57 : vector<8x128xf32>
    %59 = math.exp %58 : vector<8x128xf32>
    %cst_26 = arith.constant 1.000000e+00 : f32
    %60 = vector.broadcast %cst_26 : f32 to vector<8x128xf32>
    %61 = arith.addf %60, %59 : vector<8x128xf32>
    %62 = arith.divf %60, %61 : vector<8x128xf32>
    %cst_27 = arith.constant 2.000000e+00 : f32
    %63 = vector.broadcast %cst_27 : f32 to vector<8x128xf32>
    %64 = arith.mulf %63, %62 : vector<8x128xf32>
    %cst_28 = arith.constant 1.000000e+00 : f32
    %65 = vector.broadcast %cst_28 : f32 to vector<8x128xf32>
    %66 = arith.subf %64, %65 : vector<8x128xf32>
    %67 = arith.select %12, %66, %62 : vector<8x128xi1>, vector<8x128xf32>
    %c64_i32_29 = arith.constant 64 : i32
    %68 = tpu.dynamic_rotate %67 by %c64_i32_29 dim 1 : vector<8x128xf32>, i32 -> vector<8x128xf32>
    %c96_i32_30 = arith.constant 96 : i32
    %69 = tpu.dynamic_rotate %67 by %c96_i32_30 dim 1 : vector<8x128xf32>, i32 -> vector<8x128xf32>
    %c32_i32_31 = arith.constant 32 : i32
    %70 = tpu.dynamic_rotate %67 by %c32_i32_31 dim 1 : vector<8x128xf32>, i32 -> vector<8x128xf32>
    %71 = arith.mulf %69, %41 : vector<8x128xf32>
    %72 = arith.mulf %67, %68 : vector<8x128xf32>
    %73 = arith.addf %71, %72 : vector<8x128xf32>
    %74 = math.tanh %73 : vector<8x128xf32>
    %75 = arith.mulf %70, %74 : vector<8x128xf32>
    %76 = arith.truncf %75 : vector<8x128xf32> to vector<8x128xbf16>
    %77 = arith.index_cast %c1_i32 : i32 to index
    %c0_32 = arith.constant 0 : index
    %c0_33 = arith.constant 0 : index
    %78 = vector.load %arg4[%77, %c0_32, %c0_33] : memref<8x8x128xbf16, #tpu.memory_space<vmem>>, vector<1x8x128xbf16>
    %79 = vector.shape_cast %78 : vector<1x8x128xbf16> to vector<8x128xbf16>
    %80 = vector.shape_cast %76 : vector<8x128xbf16> to vector<1x8x128xbf16>
    tpu.vector_store %arg4[%77, %c0_32, %c0_33], %80 {strides = array<i32>} : memref<8x8x128xbf16, #tpu.memory_space<vmem>>, vector<1x8x128xbf16>,
    %c2_i32 = arith.constant 2 : i32
    %c8_i32_34 = arith.constant 8 : i32
    %81 = arith.muli %c2_i32, %c8_i32_34 : i32
    %82 = tpu.assume_multiple %81, 8 : i32
    %83 = arith.index_cast %82 : i32 to index
    %c0_35 = arith.constant 0 : index
    %84 = vector.load %arg5[%83, %c0_35] : memref<64x128xf32, #tpu.memory_space<vmem>>, vector<8x128xf32>
    %85 = arith.truncf %75 : vector<8x128xf32> to vector<8x128xbf16>
    %c0_36 = arith.constant 0 : index
    %c0_37 = arith.constant 0 : index
    %86 = vector.load %arg3[%c0_36, %c0_37] : memref<128x128xbf16, #tpu.memory_space<vmem>>, vector<128x128xbf16>
    %cst_38 = arith.constant dense<0.000000e+00> : vector<8x128xf32>
    %87 = tpu.matmul %85, %86, %cst_38 {dimension_numbers = #tpu.dot_dimension_numbers<[1], [0], [0], [1], [0, 0, 1, 1], [], []>} : vector<8x128xbf16>, vector<128x128xbf16>, vector<8x128xf32> -> vector<8x128xf32>
    %88 = arith.addf %84, %87 : vector<8x128xf32>
    %89 = arith.mulf %88, %15 : vector<8x128xf32>
    %90 = arith.negf %89 : vector<8x128xf32>
    %91 = math.exp %90 : vector<8x128xf32>
    %cst_39 = arith.constant 1.000000e+00 : f32
    %92 = vector.broadcast %cst_39 : f32 to vector<8x128xf32>
    %93 = arith.addf %92, %91 : vector<8x128xf32>
    %94 = arith.divf %92, %93 : vector<8x128xf32>
    %cst_40 = arith.constant 2.000000e+00 : f32
    %95 = vector.broadcast %cst_40 : f32 to vector<8x128xf32>
    %96 = arith.mulf %95, %94 : vector<8x128xf32>
    %cst_41 = arith.constant 1.000000e+00 : f32
    %97 = vector.broadcast %cst_41 : f32 to vector<8x128xf32>
    %98 = arith.subf %96, %97 : vector<8x128xf32>
    %99 = arith.select %12, %98, %94 : vector<8x128xi1>, vector<8x128xf32>
    %c64_i32_42 = arith.constant 64 : i32
    %100 = tpu.dynamic_rotate %99 by %c64_i32_42 dim 1 : vector<8x128xf32>, i32 -> vector<8x128xf32>
    %c96_i32_43 = arith.constant 96 : i32
    %101 = tpu.dynamic_rotate %99 by %c96_i32_43 dim 1 : vector<8x128xf32>, i32 -> vector<8x128xf32>
    %c32_i32_44 = arith.constant 32 : i32
    %102 = tpu.dynamic_rotate %99 by %c32_i32_44 dim 1 : vector<8x128xf32>, i32 -> vector<8x128xf32>
    %103 = arith.mulf %101, %73 : vector<8x128xf32>
    %104 = arith.mulf %99, %100 : vector<8x128xf32>
    %105 = arith.addf %103, %104 : vector<8x128xf32>
    %106 = math.tanh %105 : vector<8x128xf32>
    %107 = arith.mulf %102, %106 : vector<8x128xf32>
    %108 = arith.truncf %107 : vector<8x128xf32> to vector<8x128xbf16>
    %109 = arith.index_cast %c2_i32 : i32 to index
    %c0_45 = arith.constant 0 : index
    %c0_46 = arith.constant 0 : index
    %110 = vector.load %arg4[%109, %c0_45, %c0_46] : memref<8x8x128xbf16, #tpu.memory_space<vmem>>, vector<1x8x128xbf16>
    %111 = vector.shape_cast %110 : vector<1x8x128xbf16> to vector<8x128xbf16>
    %112 = vector.shape_cast %108 : vector<8x128xbf16> to vector<1x8x128xbf16>
    tpu.vector_store %arg4[%109, %c0_45, %c0_46], %112 {strides = array<i32>} : memref<8x8x128xbf16, #tpu.memory_space<vmem>>, vector<1x8x128xbf16>,
    %c3_i32 = arith.constant 3 : i32
    %c8_i32_47 = arith.constant 8 : i32
    %113 = arith.muli %c3_i32, %c8_i32_47 : i32
    %114 = tpu.assume_multiple %113, 8 : i32
    %115 = arith.index_cast %114 : i32 to index
    %c0_48 = arith.constant 0 : index
    %116 = vector.load %arg5[%115, %c0_48] : memref<64x128xf32, #tpu.memory_space<vmem>>, vector<8x128xf32>
    %117 = arith.truncf %107 : vector<8x128xf32> to vector<8x128xbf16>
    %c0_49 = arith.constant 0 : index
    %c0_50 = arith.constant 0 : index
    %118 = vector.load %arg3[%c0_49, %c0_50] : memref<128x128xbf16, #tpu.memory_space<vmem>>, vector<128x128xbf16>
    %cst_51 = arith.constant dense<0.000000e+00> : vector<8x128xf32>
    %119 = tpu.matmul %117, %118, %cst_51 {dimension_numbers = #tpu.dot_dimension_numbers<[1], [0], [0], [1], [0, 0, 1, 1], [], []>} : vector<8x128xbf16>, vector<128x128xbf16>, vector<8x128xf32> -> vector<8x128xf32>
    %120 = arith.addf %116, %119 : vector<8x128xf32>
    %121 = arith.mulf %120, %15 : vector<8x128xf32>
    %122 = arith.negf %121 : vector<8x128xf32>
    %123 = math.exp %122 : vector<8x128xf32>
    %cst_52 = arith.constant 1.000000e+00 : f32
    %124 = vector.broadcast %cst_52 : f32 to vector<8x128xf32>
    %125 = arith.addf %124, %123 : vector<8x128xf32>
    %126 = arith.divf %124, %125 : vector<8x128xf32>
    %cst_53 = arith.constant 2.000000e+00 : f32
    %127 = vector.broadcast %cst_53 : f32 to vector<8x128xf32>
    %128 = arith.mulf %127, %126 : vector<8x128xf32>
    %cst_54 = arith.constant 1.000000e+00 : f32
    %129 = vector.broadcast %cst_54 : f32 to vector<8x128xf32>
    %130 = arith.subf %128, %129 : vector<8x128xf32>
    %131 = arith.select %12, %130, %126 : vector<8x128xi1>, vector<8x128xf32>
    %c64_i32_55 = arith.constant 64 : i32
    %132 = tpu.dynamic_rotate %131 by %c64_i32_55 dim 1 : vector<8x128xf32>, i32 -> vector<8x128xf32>
    %c96_i32_56 = arith.constant 96 : i32
    %133 = tpu.dynamic_rotate %131 by %c96_i32_56 dim 1 : vector<8x128xf32>, i32 -> vector<8x128xf32>
    %c32_i32_57 = arith.constant 32 : i32
    %134 = tpu.dynamic_rotate %131 by %c32_i32_57 dim 1 : vector<8x128xf32>, i32 -> vector<8x128xf32>
    %135 = arith.mulf %133, %105 : vector<8x128xf32>
    %136 = arith.mulf %131, %132 : vector<8x128xf32>
    %137 = arith.addf %135, %136 : vector<8x128xf32>
    %138 = math.tanh %137 : vector<8x128xf32>
    %139 = arith.mulf %134, %138 : vector<8x128xf32>
    %140 = arith.truncf %139 : vector<8x128xf32> to vector<8x128xbf16>
    %141 = arith.index_cast %c3_i32 : i32 to index
    %c0_58 = arith.constant 0 : index
    %c0_59 = arith.constant 0 : index
    %142 = vector.load %arg4[%141, %c0_58, %c0_59] : memref<8x8x128xbf16, #tpu.memory_space<vmem>>, vector<1x8x128xbf16>
    %143 = vector.shape_cast %142 : vector<1x8x128xbf16> to vector<8x128xbf16>
    %144 = vector.shape_cast %140 : vector<8x128xbf16> to vector<1x8x128xbf16>
    tpu.vector_store %arg4[%141, %c0_58, %c0_59], %144 {strides = array<i32>} : memref<8x8x128xbf16, #tpu.memory_space<vmem>>, vector<1x8x128xbf16>,
    %c4_i32 = arith.constant 4 : i32
    %c8_i32_60 = arith.constant 8 : i32
    %145 = arith.muli %c4_i32, %c8_i32_60 : i32
    %146 = tpu.assume_multiple %145, 8 : i32
    %147 = arith.index_cast %146 : i32 to index
    %c0_61 = arith.constant 0 : index
    %148 = vector.load %arg5[%147, %c0_61] : memref<64x128xf32, #tpu.memory_space<vmem>>, vector<8x128xf32>
    %149 = arith.truncf %139 : vector<8x128xf32> to vector<8x128xbf16>
    %c0_62 = arith.constant 0 : index
    %c0_63 = arith.constant 0 : index
    %150 = vector.load %arg3[%c0_62, %c0_63] : memref<128x128xbf16, #tpu.memory_space<vmem>>, vector<128x128xbf16>
    %cst_64 = arith.constant dense<0.000000e+00> : vector<8x128xf32>
    %151 = tpu.matmul %149, %150, %cst_64 {dimension_numbers = #tpu.dot_dimension_numbers<[1], [0], [0], [1], [0, 0, 1, 1], [], []>} : vector<8x128xbf16>, vector<128x128xbf16>, vector<8x128xf32> -> vector<8x128xf32>
    %152 = arith.addf %148, %151 : vector<8x128xf32>
    %153 = arith.mulf %152, %15 : vector<8x128xf32>
    %154 = arith.negf %153 : vector<8x128xf32>
    %155 = math.exp %154 : vector<8x128xf32>
    %cst_65 = arith.constant 1.000000e+00 : f32
    %156 = vector.broadcast %cst_65 : f32 to vector<8x128xf32>
    %157 = arith.addf %156, %155 : vector<8x128xf32>
    %158 = arith.divf %156, %157 : vector<8x128xf32>
    %cst_66 = arith.constant 2.000000e+00 : f32
    %159 = vector.broadcast %cst_66 : f32 to vector<8x128xf32>
    %160 = arith.mulf %159, %158 : vector<8x128xf32>
    %cst_67 = arith.constant 1.000000e+00 : f32
    %161 = vector.broadcast %cst_67 : f32 to vector<8x128xf32>
    %162 = arith.subf %160, %161 : vector<8x128xf32>
    %163 = arith.select %12, %162, %158 : vector<8x128xi1>, vector<8x128xf32>
    %c64_i32_68 = arith.constant 64 : i32
    %164 = tpu.dynamic_rotate %163 by %c64_i32_68 dim 1 : vector<8x128xf32>, i32 -> vector<8x128xf32>
    %c96_i32_69 = arith.constant 96 : i32
    %165 = tpu.dynamic_rotate %163 by %c96_i32_69 dim 1 : vector<8x128xf32>, i32 -> vector<8x128xf32>
    %c32_i32_70 = arith.constant 32 : i32
    %166 = tpu.dynamic_rotate %163 by %c32_i32_70 dim 1 : vector<8x128xf32>, i32 -> vector<8x128xf32>
    %167 = arith.mulf %165, %137 : vector<8x128xf32>
    %168 = arith.mulf %163, %164 : vector<8x128xf32>
    %169 = arith.addf %167, %168 : vector<8x128xf32>
    %170 = math.tanh %169 : vector<8x128xf32>
    %171 = arith.mulf %166, %170 : vector<8x128xf32>
    %172 = arith.truncf %171 : vector<8x128xf32> to vector<8x128xbf16>
    %173 = arith.index_cast %c4_i32 : i32 to index
    %c0_71 = arith.constant 0 : index
    %c0_72 = arith.constant 0 : index
    %174 = vector.load %arg4[%173, %c0_71, %c0_72] : memref<8x8x128xbf16, #tpu.memory_space<vmem>>, vector<1x8x128xbf16>
    %175 = vector.shape_cast %174 : vector<1x8x128xbf16> to vector<8x128xbf16>
    %176 = vector.shape_cast %172 : vector<8x128xbf16> to vector<1x8x128xbf16>
    tpu.vector_store %arg4[%173, %c0_71, %c0_72], %176 {strides = array<i32>} : memref<8x8x128xbf16, #tpu.memory_space<vmem>>, vector<1x8x128xbf16>,
    %c5_i32 = arith.constant 5 : i32
    %c8_i32_73 = arith.constant 8 : i32
    %177 = arith.muli %c5_i32, %c8_i32_73 : i32
    %178 = tpu.assume_multiple %177, 8 : i32
    %179 = arith.index_cast %178 : i32 to index
    %c0_74 = arith.constant 0 : index
    %180 = vector.load %arg5[%179, %c0_74] : memref<64x128xf32, #tpu.memory_space<vmem>>, vector<8x128xf32>
    %181 = arith.truncf %171 : vector<8x128xf32> to vector<8x128xbf16>
    %c0_75 = arith.constant 0 : index
    %c0_76 = arith.constant 0 : index
    %182 = vector.load %arg3[%c0_75, %c0_76] : memref<128x128xbf16, #tpu.memory_space<vmem>>, vector<128x128xbf16>
    %cst_77 = arith.constant dense<0.000000e+00> : vector<8x128xf32>
    %183 = tpu.matmul %181, %182, %cst_77 {dimension_numbers = #tpu.dot_dimension_numbers<[1], [0], [0], [1], [0, 0, 1, 1], [], []>} : vector<8x128xbf16>, vector<128x128xbf16>, vector<8x128xf32> -> vector<8x128xf32>
    %184 = arith.addf %180, %183 : vector<8x128xf32>
    %185 = arith.mulf %184, %15 : vector<8x128xf32>
    %186 = arith.negf %185 : vector<8x128xf32>
    %187 = math.exp %186 : vector<8x128xf32>
    %cst_78 = arith.constant 1.000000e+00 : f32
    %188 = vector.broadcast %cst_78 : f32 to vector<8x128xf32>
    %189 = arith.addf %188, %187 : vector<8x128xf32>
    %190 = arith.divf %188, %189 : vector<8x128xf32>
    %cst_79 = arith.constant 2.000000e+00 : f32
    %191 = vector.broadcast %cst_79 : f32 to vector<8x128xf32>
    %192 = arith.mulf %191, %190 : vector<8x128xf32>
    %cst_80 = arith.constant 1.000000e+00 : f32
    %193 = vector.broadcast %cst_80 : f32 to vector<8x128xf32>
    %194 = arith.subf %192, %193 : vector<8x128xf32>
    %195 = arith.select %12, %194, %190 : vector<8x128xi1>, vector<8x128xf32>
    %c64_i32_81 = arith.constant 64 : i32
    %196 = tpu.dynamic_rotate %195 by %c64_i32_81 dim 1 : vector<8x128xf32>, i32 -> vector<8x128xf32>
    %c96_i32_82 = arith.constant 96 : i32
    %197 = tpu.dynamic_rotate %195 by %c96_i32_82 dim 1 : vector<8x128xf32>, i32 -> vector<8x128xf32>
    %c32_i32_83 = arith.constant 32 : i32
    %198 = tpu.dynamic_rotate %195 by %c32_i32_83 dim 1 : vector<8x128xf32>, i32 -> vector<8x128xf32>
    %199 = arith.mulf %197, %169 : vector<8x128xf32>
    %200 = arith.mulf %195, %196 : vector<8x128xf32>
    %201 = arith.addf %199, %200 : vector<8x128xf32>
    %202 = math.tanh %201 : vector<8x128xf32>
    %203 = arith.mulf %198, %202 : vector<8x128xf32>
    %204 = arith.truncf %203 : vector<8x128xf32> to vector<8x128xbf16>
    %205 = arith.index_cast %c5_i32 : i32 to index
    %c0_84 = arith.constant 0 : index
    %c0_85 = arith.constant 0 : index
    %206 = vector.load %arg4[%205, %c0_84, %c0_85] : memref<8x8x128xbf16, #tpu.memory_space<vmem>>, vector<1x8x128xbf16>
    %207 = vector.shape_cast %206 : vector<1x8x128xbf16> to vector<8x128xbf16>
    %208 = vector.shape_cast %204 : vector<8x128xbf16> to vector<1x8x128xbf16>
    tpu.vector_store %arg4[%205, %c0_84, %c0_85], %208 {strides = array<i32>} : memref<8x8x128xbf16, #tpu.memory_space<vmem>>, vector<1x8x128xbf16>,
    %c6_i32 = arith.constant 6 : i32
    %c8_i32_86 = arith.constant 8 : i32
    %209 = arith.muli %c6_i32, %c8_i32_86 : i32
    %210 = tpu.assume_multiple %209, 8 : i32
    %211 = arith.index_cast %210 : i32 to index
    %c0_87 = arith.constant 0 : index
    %212 = vector.load %arg5[%211, %c0_87] : memref<64x128xf32, #tpu.memory_space<vmem>>, vector<8x128xf32>
    %213 = arith.truncf %203 : vector<8x128xf32> to vector<8x128xbf16>
    %c0_88 = arith.constant 0 : index
    %c0_89 = arith.constant 0 : index
    %214 = vector.load %arg3[%c0_88, %c0_89] : memref<128x128xbf16, #tpu.memory_space<vmem>>, vector<128x128xbf16>
    %cst_90 = arith.constant dense<0.000000e+00> : vector<8x128xf32>
    %215 = tpu.matmul %213, %214, %cst_90 {dimension_numbers = #tpu.dot_dimension_numbers<[1], [0], [0], [1], [0, 0, 1, 1], [], []>} : vector<8x128xbf16>, vector<128x128xbf16>, vector<8x128xf32> -> vector<8x128xf32>
    %216 = arith.addf %212, %215 : vector<8x128xf32>
    %217 = arith.mulf %216, %15 : vector<8x128xf32>
    %218 = arith.negf %217 : vector<8x128xf32>
    %219 = math.exp %218 : vector<8x128xf32>
    %cst_91 = arith.constant 1.000000e+00 : f32
    %220 = vector.broadcast %cst_91 : f32 to vector<8x128xf32>
    %221 = arith.addf %220, %219 : vector<8x128xf32>
    %222 = arith.divf %220, %221 : vector<8x128xf32>
    %cst_92 = arith.constant 2.000000e+00 : f32
    %223 = vector.broadcast %cst_92 : f32 to vector<8x128xf32>
    %224 = arith.mulf %223, %222 : vector<8x128xf32>
    %cst_93 = arith.constant 1.000000e+00 : f32
    %225 = vector.broadcast %cst_93 : f32 to vector<8x128xf32>
    %226 = arith.subf %224, %225 : vector<8x128xf32>
    %227 = arith.select %12, %226, %222 : vector<8x128xi1>, vector<8x128xf32>
    %c64_i32_94 = arith.constant 64 : i32
    %228 = tpu.dynamic_rotate %227 by %c64_i32_94 dim 1 : vector<8x128xf32>, i32 -> vector<8x128xf32>
    %c96_i32_95 = arith.constant 96 : i32
    %229 = tpu.dynamic_rotate %227 by %c96_i32_95 dim 1 : vector<8x128xf32>, i32 -> vector<8x128xf32>
    %c32_i32_96 = arith.constant 32 : i32
    %230 = tpu.dynamic_rotate %227 by %c32_i32_96 dim 1 : vector<8x128xf32>, i32 -> vector<8x128xf32>
    %231 = arith.mulf %229, %201 : vector<8x128xf32>
    %232 = arith.mulf %227, %228 : vector<8x128xf32>
    %233 = arith.addf %231, %232 : vector<8x128xf32>
    %234 = math.tanh %233 : vector<8x128xf32>
    %235 = arith.mulf %230, %234 : vector<8x128xf32>
    %236 = arith.truncf %235 : vector<8x128xf32> to vector<8x128xbf16>
    %237 = arith.index_cast %c6_i32 : i32 to index
    %c0_97 = arith.constant 0 : index
    %c0_98 = arith.constant 0 : index
    %238 = vector.load %arg4[%237, %c0_97, %c0_98] : memref<8x8x128xbf16, #tpu.memory_space<vmem>>, vector<1x8x128xbf16>
    %239 = vector.shape_cast %238 : vector<1x8x128xbf16> to vector<8x128xbf16>
    %240 = vector.shape_cast %236 : vector<8x128xbf16> to vector<1x8x128xbf16>
    tpu.vector_store %arg4[%237, %c0_97, %c0_98], %240 {strides = array<i32>} : memref<8x8x128xbf16, #tpu.memory_space<vmem>>, vector<1x8x128xbf16>,
    %c7_i32 = arith.constant 7 : i32
    %c8_i32_99 = arith.constant 8 : i32
    %241 = arith.muli %c7_i32, %c8_i32_99 : i32
    %242 = tpu.assume_multiple %241, 8 : i32
    %243 = arith.index_cast %242 : i32 to index
    %c0_100 = arith.constant 0 : index
    %244 = vector.load %arg5[%243, %c0_100] : memref<64x128xf32, #tpu.memory_space<vmem>>, vector<8x128xf32>
    %245 = arith.truncf %235 : vector<8x128xf32> to vector<8x128xbf16>
    %c0_101 = arith.constant 0 : index
    %c0_102 = arith.constant 0 : index
    %246 = vector.load %arg3[%c0_101, %c0_102] : memref<128x128xbf16, #tpu.memory_space<vmem>>, vector<128x128xbf16>
    %cst_103 = arith.constant dense<0.000000e+00> : vector<8x128xf32>
    %247 = tpu.matmul %245, %246, %cst_103 {dimension_numbers = #tpu.dot_dimension_numbers<[1], [0], [0], [1], [0, 0, 1, 1], [], []>} : vector<8x128xbf16>, vector<128x128xbf16>, vector<8x128xf32> -> vector<8x128xf32>
    %248 = arith.addf %244, %247 : vector<8x128xf32>
    %249 = arith.mulf %248, %15 : vector<8x128xf32>
    %250 = arith.negf %249 : vector<8x128xf32>
    %251 = math.exp %250 : vector<8x128xf32>
    %cst_104 = arith.constant 1.000000e+00 : f32
    %252 = vector.broadcast %cst_104 : f32 to vector<8x128xf32>
    %253 = arith.addf %252, %251 : vector<8x128xf32>
    %254 = arith.divf %252, %253 : vector<8x128xf32>
    %cst_105 = arith.constant 2.000000e+00 : f32
    %255 = vector.broadcast %cst_105 : f32 to vector<8x128xf32>
    %256 = arith.mulf %255, %254 : vector<8x128xf32>
    %cst_106 = arith.constant 1.000000e+00 : f32
    %257 = vector.broadcast %cst_106 : f32 to vector<8x128xf32>
    %258 = arith.subf %256, %257 : vector<8x128xf32>
    %259 = arith.select %12, %258, %254 : vector<8x128xi1>, vector<8x128xf32>
    %c64_i32_107 = arith.constant 64 : i32
    %260 = tpu.dynamic_rotate %259 by %c64_i32_107 dim 1 : vector<8x128xf32>, i32 -> vector<8x128xf32>
    %c96_i32_108 = arith.constant 96 : i32
    %261 = tpu.dynamic_rotate %259 by %c96_i32_108 dim 1 : vector<8x128xf32>, i32 -> vector<8x128xf32>
    %c32_i32_109 = arith.constant 32 : i32
    %262 = tpu.dynamic_rotate %259 by %c32_i32_109 dim 1 : vector<8x128xf32>, i32 -> vector<8x128xf32>
    %263 = arith.mulf %261, %233 : vector<8x128xf32>
    %264 = arith.mulf %259, %260 : vector<8x128xf32>
    %265 = arith.addf %263, %264 : vector<8x128xf32>
    %266 = math.tanh %265 : vector<8x128xf32>
    %267 = arith.mulf %262, %266 : vector<8x128xf32>
    %268 = arith.truncf %267 : vector<8x128xf32> to vector<8x128xbf16>
    %269 = arith.index_cast %c7_i32 : i32 to index
    %c0_110 = arith.constant 0 : index
    %c0_111 = arith.constant 0 : index
    %270 = vector.load %arg4[%269, %c0_110, %c0_111] : memref<8x8x128xbf16, #tpu.memory_space<vmem>>, vector<1x8x128xbf16>
    %271 = vector.shape_cast %270 : vector<1x8x128xbf16> to vector<8x128xbf16>
    %272 = vector.shape_cast %268 : vector<8x128xbf16> to vector<1x8x128xbf16>
    tpu.vector_store %arg4[%269, %c0_110, %c0_111], %272 {strides = array<i32>} : memref<8x8x128xbf16, #tpu.memory_space<vmem>>, vector<1x8x128xbf16>,
    %c8_i32_112 = arith.constant 8 : i32
    return
  }
}

</mosaic_0001>

<llo_original>
// kernel: tpu_custom_call.1
$region0: #{tpu_custom_call.1}
  #allocation0 [shape = 'u32[]', space=smem, size = 0x4, offset = 0x4, fixed_abs, tag = 'smem constant byte address 0x4 - core index']
  #allocation1 [shape = 'u32[144,128]{1,0:T(1,128)}', space=vmem, size = 0x12000, scoped, tag = 'internal scratch']
  #allocation2 [shape = 'f32[64,128]{1,0:T(8,128)}', space=vmem, size = 0x8000, scoped, tag = 'scratch operand']
  %s0 = inlined_call_operand.vmem [shape: bf16[64,32], index: 0, kind: input, shape index: {}]
  %s1 = inlined_call_operand.vmem [shape: bf16[32,128], index: 1, kind: input, shape index: {}]
  %s2 = inlined_call_operand.vmem [shape: f32[1,128], index: 2, kind: input, shape index: {}]
  %s3 = inlined_call_operand.hbm [shape: bf16[128,128], index: 3, kind: input, shape index: {}]
  %s4 = inlined_call_operand.hbm [shape: bf16[8,8,128], index: 4, kind: output, shape index: {}]
  %s5 = sld [smem:[#allocation0]]
  $region30: #{tpu_custom_call.1} parent=0
    _
  %s7 = ssub.s32 1, %s5
  %s8 = scalar_select 0, %s7, %s5
  $region1: #{tpu_custom_call.1} parent=0
    #allocation3 [shape = 'u8[32768]{0}', space=vmem, size = 0x8000, scoped, tag = 'input window, operand 3, single buffered']
    #allocation4 [shape = 's32[1]{0}', space=sflag, size = 0x4, scoped, tag = 'scoped memory for tpu_custom_call.1']
    #allocation5 [shape = 's32[1]{0}', space=sflag, size = 0x4, scoped, tag = 'scoped memory for tpu_custom_call.1']
    #allocation6 [shape = 'u8[16384]{0}', space=vmem, size = 0x4000, scoped, tag = 'output window, operand 0, single buffered']
    %9 = vsyncpa [#allocation4], 0
    %10 = vsyncpa [#allocation5], 0
    // Predicated region
    $region2: #{tpu_custom_call.1} parent=1 // pred_check
      _
    $region3: #{tpu_custom_call.1} parent=1 // pred_check_branch
      %12 = sbr.rel (0) target = $region5
    $region4: #{tpu_custom_call.1} parent=1 // pred_region
      _
    $region5: #{tpu_custom_call.1} parent=1 // pred_fallthru
      _
    // Predicated region
    $region6: #{tpu_custom_call.1} parent=1 // pred_check
      _
    $region7: #{tpu_custom_call.1} parent=1 // pred_check_branch
      %14 = sbr.rel (0) target = $region9
    $region8: #{tpu_custom_call.1} parent=1 // pred_region
      _
    $region9: #{tpu_custom_call.1} parent=1 // pred_fallthru
      _
    // Predicated region
    $region10: #{tpu_custom_call.1} parent=1 // pred_check
      _
    $region11: #{tpu_custom_call.1} parent=1 // pred_check_branch
      %16 = sbr.rel (0) target = $region13
    $region12: #{tpu_custom_call.1} parent=1 // pred_region
      _
    $region13: #{tpu_custom_call.1} parent=1 // pred_fallthru
      _
    // Predicated region
    $region14: #{tpu_custom_call.1} parent=1 // pred_check
      _
    $region15: #{tpu_custom_call.1} parent=1 // pred_check_branch
      %18 = sbr.rel (0) target = $region17
    $region16: #{tpu_custom_call.1} parent=1 // pred_region
      %s20 = ssub.s32 1024, 1024
      %21 = vsyncadd [#allocation4], %s20
      %s22 = sshll.u32 [#allocation3], 4
      %s23 = int_to_ptr.vmem [resolvable:$true] %s22
      %28 = dma.hbm_to_vmem [thread:$0]  %s3, 1024, %s23, [#allocation4], 64, 64, 4
    $region17: #{tpu_custom_call.1} parent=1 // pred_fallthru
      _
    // Predicated region
    $region18: #{tpu_custom_call.1} parent=1 // pred_check
      _
    $region19: #{tpu_custom_call.1} parent=1 // pred_check_branch
      %30 = sbr.rel (0) target = $region21
    $region20: #{tpu_custom_call.1} parent=1 // pred_region
      %31 = dma.done [#allocation4], 1024
    $region21: #{tpu_custom_call.1} parent=1 // pred_fallthru
      _
    %v33 = vld [vmem:[%s0] sm:$0xf]
    %v34 = vld [vmem:[%s0 + $0x4] sm:$0xf]
    %v35 = vld [vmem:[%s0 + $0x8] sm:$0xf]
    %v36 = vld [vmem:[%s0 + $0xc] sm:$0xf]
    %v37 = vld [vmem:[%s0 + $0x10] sm:$0xf]
    %v38 = vld [vmem:[%s0 + $0x14] sm:$0xf]
    %v39 = vld [vmem:[%s0 + $0x18] sm:$0xf]
    %v40 = vld [vmem:[%s0 + $0x1c] sm:$0xf]
    %v41 = vld [vmem:[%s1] sm:$0xf]
    %v42 = vld [vmem:[%s1 + $0x4] sm:$0xf]
    %v43 = vld [vmem:[%s1 + $0x8] sm:$0xf]
    %v44 = vld [vmem:[%s1 + $0xc] sm:$0xf]
    %v45 = vld [vmem:[%s2] sm:$0x1]
    %v47 = vlaneseq
    %v48 = vshrl.u32 %v47, 7
    %v49 = vsub.s32 0, %v48
    %v50 = vrot.slane %v45, %v49
    %v60 = vunpack.c.l.b16 %v33
    %v61 = vunpack.c.l.b16 %v34
    %v62 = vunpack.c.l.b16 %v35
    %v63 = vunpack.c.l.b16 %v36
    %v64 = vunpack.c.l.b16 %v37
    %v65 = vunpack.c.l.b16 %v38
    %v66 = vunpack.c.l.b16 %v39
    %v67 = vunpack.c.l.b16 %v40
    %v68 = vpack.c.b16 %v61, %v60
    %v69 = vpack.c.b16 %v63, %v62
    %v70 = vpack.c.b16 %v65, %v64
    %v71 = vpack.c.b16 %v67, %v66
    %v76 = vunpack.c.l.b16 %v41
    %v77 = vunpack.c.l.b16 %v42
    %v78 = vunpack.c.l.b16 %v43
    %v79 = vunpack.c.l.b16 %v44
    %v80 = vpack.c.b16 %v77, %v76
    %v81 = vpack.c.b16 %v79, %v78
    %vm84 = vcmask 261120
    %v86 = vsel %vm84, %v68, 0
    %v89 = vsel %vm84, %v69, 0
    %v92 = vsel %vm84, %v70, 0
    %v95 = vsel %vm84, %v71, 0
    %97 = vmatprep.subr.bf16.mxu0 0
    %98 = vmatpush1.bf16.msra.mxu0 %v80
    %99 = vmatprep.subr.bf16.mxu0 0
    %100 = vmatpush1.bf16.msra.mxu0 %v81
    %101 = vmatprep.subr.bf16.mxu0 0
    %102 = vmatpush1.bf16.msra.mxu0 0
    %103 = vmatprep.subr.bf16.mxu0 0
    %104 = vmatpush1.bf16.msra.mxu0 0
    %105 = vmatprep.subr.bf16.mxu0 0
    %106 = vmatpush1.bf16.msra.mxu0 0
    %107 = vmatprep.subr.bf16.mxu0 0
    %108 = vmatpush1.bf16.msra.mxu0 0
    %109 = vmatprep.subr.bf16.mxu0 0
    %110 = vmatpush1.bf16.msra.mxu0 0
    %111 = vmatprep.subr.bf16.mxu0 0
    %112 = vmatpush1.bf16.msra.mxu0 0
    %113 = vmatprep.subr.bf16.mxu0 0
    %114 = vmatpush1.bf16.msra.mxu0 0
    %115 = vmatprep.subr.bf16.mxu0 0
    %116 = vmatpush1.bf16.msra.mxu0 0
    %117 = vmatprep.subr.bf16.mxu0 0
    %118 = vmatpush1.bf16.msra.mxu0 0
    %119 = vmatprep.subr.bf16.mxu0 0
    %120 = vmatpush1.bf16.msra.mxu0 0
    %121 = vmatprep.subr.bf16.mxu0 0
    %122 = vmatpush1.bf16.msra.mxu0 0
    %123 = vmatprep.subr.bf16.mxu0 0
    %124 = vmatpush1.bf16.msra.mxu0 0
    %125 = vmatprep.subr.bf16.mxu0 0
    %126 = vmatpush1.bf16.msra.mxu0 0
    %127 = vmatprep.subr.bf16.mxu0 0
    %128 = vmatpush1.bf16.msra.mxu0 0
    %129 = vmatprep.mubr.bf16.mxu0 0
    %130 = vmatmul.mubr.bf16.gmra.mrb[0].mxu0 %v86
    %v131 = vpop.f32.mrb[0].mxu0
    %v132 = vadd.f32 %v50, %v131
    %v133 = vpop.f32.mrb[0].mxu0
    %v134 = vpop.f32.mrb[0].mxu0
    %v135 = vadd.f32 %v50, %v134
    %v136 = vpop.f32.mrb[0].mxu0
    %137 = vmatprep.mubr.bf16.mxu0 0
    %138 = vmatmul.mubr.bf16.gmra.mrb[0].mxu0 %v89
    %v139 = vpop.f32.mrb[0].mxu0
    %v140 = vadd.f32 %v50, %v139
    %v141 = vpop.f32.mrb[0].mxu0
    %v142 = vpop.f32.mrb[0].mxu0
    %v143 = vadd.f32 %v50, %v142
    %v144 = vpop.f32.mrb[0].mxu0
    %145 = vmatprep.mubr.bf16.mxu0 0
    %146 = vmatmul.mubr.bf16.gmra.mrb[0].mxu0 %v92
    %v147 = vpop.f32.mrb[0].mxu0
    %v148 = vadd.f32 %v50, %v147
    %v149 = vpop.f32.mrb[0].mxu0
    %v150 = vpop.f32.mrb[0].mxu0
    %v151 = vadd.f32 %v50, %v150
    %v152 = vpop.f32.mrb[0].mxu0
    %153 = vmatprep.mubr.bf16.mxu0 0
    %154 = vmatmul.mubr.bf16.gmra.mrb[0].mxu0 %v95
    %v155 = vpop.f32.mrb[0].mxu0
    %v156 = vadd.f32 %v50, %v155
    %v157 = vpop.f32.mrb[0].mxu0
    %v158 = vpop.f32.mrb[0].mxu0
    %v159 = vadd.f32 %v50, %v158
    %v160 = vpop.f32.mrb[0].mxu0
    %161 = vdwg.mxu0
    %162 = vst [vmem:[#allocation2] sm:$0xff] %v132
    %163 = vst [vmem:[#allocation2 + $0x8] sm:$0xff] %v135
    %164 = vst [vmem:[#allocation2 + $0x10] sm:$0xff] %v140
    %165 = vst [vmem:[#allocation2 + $0x18] sm:$0xff] %v143
    %166 = vst [vmem:[#allocation2 + $0x20] sm:$0xff] %v148
    %167 = vst [vmem:[#allocation2 + $0x28] sm:$0xff] %v151
    %168 = vst [vmem:[#allocation2 + $0x30] sm:$0xff] %v156
    %169 = vst [vmem:[#allocation2 + $0x38] sm:$0xff] %v159
    %v170 = vlaneseq
    %v171 = vand.u32 %v170, 127
    %vm172 = vcmp.ge.s32.totalorder %v171, 64
    %vm173 = vcmp.lt.s32.totalorder %v171, 96
    %vm174 = vmand %vm172, %vm173
    %v175 = vsel %vm174, 2.0, 1.0
    %v176 = vld [vmem:[#allocation2] sm:$0xff]
    %v177 = vld [vmem:[#allocation3] sm:$0xf]
    %v178 = vld [vmem:[#allocation3 + $0x4] sm:$0xf]
    %v179 = vld [vmem:[#allocation3 + $0x8] sm:$0xf]
    %v180 = vld [vmem:[#allocation3 + $0xc] sm:$0xf]
    %v181 = vld [vmem:[#allocation3 + $0x10] sm:$0xf]
    %v182 = vld [vmem:[#allocation3 + $0x14] sm:$0xf]
    %v183 = vld [vmem:[#allocation3 + $0x18] sm:$0xf]
    %v184 = vld [vmem:[#allocation3 + $0x1c] sm:$0xf]
    %v185 = vld [vmem:[#allocation3 + $0x20] sm:$0xf]
    %v186 = vld [vmem:[#allocation3 + $0x24] sm:$0xf]
    %v187 = vld [vmem:[#allocation3 + $0x28] sm:$0xf]
    %v188 = vld [vmem:[#allocation3 + $0x2c] sm:$0xf]
    %v189 = vld [vmem:[#allocation3 + $0x30] sm:$0xf]
    %v190 = vld [vmem:[#allocation3 + $0x34] sm:$0xf]
    %v191 = vld [vmem:[#allocation3 + $0x38] sm:$0xf]
    %v192 = vld [vmem:[#allocation3 + $0x3c] sm:$0xf]
    %v209 = vunpack.c.l.b16 %v177
    %v210 = vunpack.c.l.b16 %v178
    %v211 = vunpack.c.l.b16 %v179
    %v212 = vunpack.c.l.b16 %v180
    %v213 = vunpack.c.l.b16 %v181
    %v214 = vunpack.c.l.b16 %v182
    %v215 = vunpack.c.l.b16 %v183
    %v216 = vunpack.c.l.b16 %v184
    %v217 = vunpack.c.l.b16 %v185
    %v218 = vunpack.c.l.b16 %v186
    %v219 = vunpack.c.l.b16 %v187
    %v220 = vunpack.c.l.b16 %v188
    %v221 = vunpack.c.l.b16 %v189
    %v222 = vunpack.c.l.b16 %v190
    %v223 = vunpack.c.l.b16 %v191
    %v224 = vunpack.c.l.b16 %v192
    %v225 = vpack.c.b16 %v210, %v209
    %v226 = vpack.c.b16 %v212, %v211
    %v227 = vpack.c.b16 %v214, %v213
    %v228 = vpack.c.b16 %v216, %v215
    %v229 = vpack.c.b16 %v218, %v217
    %v230 = vpack.c.b16 %v220, %v219
    %v231 = vpack.c.b16 %v222, %v221
    %v232 = vpack.c.b16 %v224, %v223
    %241 = vmatprep.subr.bf16.mxu0 0
    %242 = vmatpush1.bf16.msra.mxu0 %v225
    %243 = vmatprep.subr.bf16.mxu0 0
    %244 = vmatpush1.bf16.msra.mxu0 %v226
    %245 = vmatprep.subr.bf16.mxu0 0
    %246 = vmatpush1.bf16.msra.mxu0 %v227
    %247 = vmatprep.subr.bf16.mxu0 0
    %248 = vmatpush1.bf16.msra.mxu0 %v228
    %249 = vmatprep.subr.bf16.mxu0 0
    %250 = vmatpush1.bf16.msra.mxu0 %v229
    %251 = vmatprep.subr.bf16.mxu0 0
    %252 = vmatpush1.bf16.msra.mxu0 %v230
    %253 = vmatprep.subr.bf16.mxu0 0
    %254 = vmatpush1.bf16.msra.mxu0 %v231
    %255 = vmatprep.subr.bf16.mxu0 0
    %256 = vmatpush1.bf16.msra.mxu0 %v232
    %257 = vmatprep.subr.bf16.mxu0 0
    %258 = vmatpush1.bf16.msra.mxu0 0
    %259 = vmatprep.subr.bf16.mxu0 0
    %260 = vmatpush1.bf16.msra.mxu0 0
    %261 = vmatprep.subr.bf16.mxu0 0
    %262 = vmatpush1.bf16.msra.mxu0 0
    %263 = vmatprep.subr.bf16.mxu0 0
    %264 = vmatpush1.bf16.msra.mxu0 0
    %265 = vmatprep.subr.bf16.mxu0 0
    %266 = vmatpush1.bf16.msra.mxu0 0
    %267 = vmatprep.subr.bf16.mxu0 0
    %268 = vmatpush1.bf16.msra.mxu0 0
    %269 = vmatprep.subr.bf16.mxu0 0
    %270 = vmatpush1.bf16.msra.mxu0 0
    %271 = vmatprep.subr.bf16.mxu0 0
    %272 = vmatpush1.bf16.msra.mxu0 0
    %273 = vmatprep.mubr.bf16.mxu0 0
    %274 = vmatmul.mubr.bf16.gmra.mrb[0].mxu0 0
    %v275 = vpop.f32.mrb[0].mxu0
    %v276 = vadd.f32 0.0, %v275
    %v277 = vpop.f32.mrb[0].mxu0
    %v278 = vpop.f32.mrb[0].mxu0
    %v279 = vpop.f32.mrb[0].mxu0
    %280 = vdwg.mxu0
    %v281 = vadd.f32 %v176, %v276
    %v282 = vmul.f32 %v281, %v175
    %v283 = vxor.u32 %v282, 2147483648
    %v284 = vmul.f32 %v283, 1.442695
    %v285 = vpow.pop %v284
    %v286 = vadd.f32 %v285, 1.0
    %v287 = vrcp.pop %v286
    %v288 = vmul.f32 1.0, %v287
    %v289 = vmul.f32 %v288, 2.0
    %v290 = vsub.f32 %v289, 1.0
    %v291 = vsel %vm174, %v290, %v288
    %292 = vrot.lane.b32.xlu0 %v291, 64
    %v293 = vpop.permute.xlu0 %292
    %294 = vrot.lane.b32.xlu0 %v291, 96
    %v295 = vpop.permute.xlu0 %294
    %296 = vrot.lane.b32.xlu0 %v291, 32
    %v297 = vpop.permute.xlu0 %296
    %v298 = vmul.f32 %v295, 0.0
    %v299 = vmul.f32 %v291, %v293
    %v300 = vadd.f32 %v298, %v299
    %v301 = vtanh.pop %v300
    %v302 = vmul.f32 %v297, %v301
    %v303 = vpack.c.bf16 %v302, %v302
    %304 = vst [vmem:[#allocation6] sm:$0xf] %v303
    %s305 = scalar_lea.vmem [#allocation2], 8
    %v306 = vld [vmem:[%s305] sm:$0xff]
    %v307 = vld [vmem:[#allocation3] sm:$0xf]
    %v308 = vld [vmem:[#allocation3 + $0x4] sm:$0xf]
    %v309 = vld [vmem:[#allocation3 + $0x8] sm:$0xf]
    %v310 = vld [vmem:[#allocation3 + $0xc] sm:$0xf]
    %v311 = vld [vmem:[#allocation3 + $0x10] sm:$0xf]
    %v312 = vld [vmem:[#allocation3 + $0x14] sm:$0xf]
    %v313 = vld [vmem:[#allocation3 + $0x18] sm:$0xf]
    %v314 = vld [vmem:[#allocation3 + $0x1c] sm:$0xf]
    %v315 = vld [vmem:[#allocation3 + $0x20] sm:$0xf]
    %v316 = vld [vmem:[#allocation3 + $0x24] sm:$0xf]
    %v317 = vld [vmem:[#allocation3 + $0x28] sm:$0xf]
    %v318 = vld [vmem:[#allocation3 + $0x2c] sm:$0xf]
    %v319 = vld [vmem:[#allocation3 + $0x30] sm:$0xf]
    %v320 = vld [vmem:[#allocation3 + $0x34] sm:$0xf]
    %v321 = vld [vmem:[#allocation3 + $0x38] sm:$0xf]
    %v322 = vld [vmem:[#allocation3 + $0x3c] sm:$0xf]
    %v339 = vunpack.c.l.b16 %v307
    %v340 = vunpack.c.l.b16 %v308
    %v341 = vunpack.c.l.b16 %v309
    %v342 = vunpack.c.l.b16 %v310
    %v343 = vunpack.c.l.b16 %v311
    %v344 = vunpack.c.l.b16 %v312
    %v345 = vunpack.c.l.b16 %v313
    %v346 = vunpack.c.l.b16 %v314
    %v347 = vunpack.c.l.b16 %v315
    %v348 = vunpack.c.l.b16 %v316
    %v349 = vunpack.c.l.b16 %v317
    %v350 = vunpack.c.l.b16 %v318
    %v351 = vunpack.c.l.b16 %v319
    %v352 = vunpack.c.l.b16 %v320
    %v353 = vunpack.c.l.b16 %v321
    %v354 = vunpack.c.l.b16 %v322
    %v355 = vpack.c.b16 %v340, %v339
    %v356 = vpack.c.b16 %v342, %v341
    %v357 = vpack.c.b16 %v344, %v343
    %v358 = vpack.c.b16 %v346, %v345
    %v359 = vpack.c.b16 %v348, %v347
    %v360 = vpack.c.b16 %v350, %v349
    %v361 = vpack.c.b16 %v352, %v351
    %v362 = vpack.c.b16 %v354, %v353
    %371 = vmatprep.subr.bf16.mxu0 0
    %372 = vmatpush1.bf16.msra.mxu0 %v355
    %373 = vmatprep.subr.bf16.mxu0 0
    %374 = vmatpush1.bf16.msra.mxu0 %v356
    %375 = vmatprep.subr.bf16.mxu0 0
    %376 = vmatpush1.bf16.msra.mxu0 %v357
    %377 = vmatprep.subr.bf16.mxu0 0
    %378 = vmatpush1.bf16.msra.mxu0 %v358
    %379 = vmatprep.subr.bf16.mxu0 0
    %380 = vmatpush1.bf16.msra.mxu0 %v359
    %381 = vmatprep.subr.bf16.mxu0 0
    %382 = vmatpush1.bf16.msra.mxu0 %v360
    %383 = vmatprep.subr.bf16.mxu0 0
    %384 = vmatpush1.bf16.msra.mxu0 %v361
    %385 = vmatprep.subr.bf16.mxu0 0
    %386 = vmatpush1.bf16.msra.mxu0 %v362
    %387 = vmatprep.subr.bf16.mxu0 0
    %388 = vmatpush1.bf16.msra.mxu0 0
    %389 = vmatprep.subr.bf16.mxu0 0
    %390 = vmatpush1.bf16.msra.mxu0 0
    %391 = vmatprep.subr.bf16.mxu0 0
    %392 = vmatpush1.bf16.msra.mxu0 0
    %393 = vmatprep.subr.bf16.mxu0 0
    %394 = vmatpush1.bf16.msra.mxu0 0
    %395 = vmatprep.subr.bf16.mxu0 0
    %396 = vmatpush1.bf16.msra.mxu0 0
    %397 = vmatprep.subr.bf16.mxu0 0
    %398 = vmatpush1.bf16.msra.mxu0 0
    %399 = vmatprep.subr.bf16.mxu0 0
    %400 = vmatpush1.bf16.msra.mxu0 0
    %401 = vmatprep.subr.bf16.mxu0 0
    %402 = vmatpush1.bf16.msra.mxu0 0
    %403 = vmatprep.mubr.bf16.mxu0 0
    %404 = vmatmul.mubr.bf16.gmra.mrb[0].mxu0 %v303
    %v405 = vpop.f32.mrb[0].mxu0
    %v406 = vadd.f32 0.0, %v405
    %v407 = vpop.f32.mrb[0].mxu0
    %v408 = vpop.f32.mrb[0].mxu0
    %v409 = vpop.f32.mrb[0].mxu0
    %410 = vdwg.mxu0
    %v411 = vadd.f32 %v306, %v406
    %v412 = vmul.f32 %v411, %v175
    %v413 = vxor.u32 %v412, 2147483648
    %v414 = vmul.f32 %v413, 1.442695
    %v415 = vpow.pop %v414
    %v416 = vadd.f32 %v415, 1.0
    %v417 = vrcp.pop %v416
    %v418 = vmul.f32 1.0, %v417
    %v419 = vmul.f32 %v418, 2.0
    %v420 = vsub.f32 %v419, 1.0
    %v421 = vsel %vm174, %v420, %v418
    %422 = vrot.lane.b32.xlu0 %v421, 64
    %v423 = vpop.permute.xlu0 %422
    %424 = vrot.lane.b32.xlu0 %v421, 96
    %v425 = vpop.permute.xlu0 %424
    %426 = vrot.lane.b32.xlu0 %v421, 32
    %v427 = vpop.permute.xlu0 %426
    %v428 = vmul.f32 %v425, %v300
    %v429 = vmul.f32 %v421, %v423
    %v430 = vadd.f32 %v428, %v429
    %v431 = vtanh.pop %v430
    %v432 = vmul.f32 %v427, %v431
    %v433 = vpack.c.bf16 %v432, %v432
    %s434 = scalar_lea.vmem [#allocation6], 4
    %435 = vst [vmem:[%s434] sm:$0xf] %v433
    %s436 = scalar_lea.vmem [#allocation2], 16
    %v437 = vld [vmem:[%s436] sm:$0xff]
    %v438 = vld [vmem:[#allocation3] sm:$0xf]
    %v439 = vld [vmem:[#allocation3 + $0x4] sm:$0xf]
    %v440 = vld [vmem:[#allocation3 + $0x8] sm:$0xf]
    %v441 = vld [vmem:[#allocation3 + $0xc] sm:$0xf]
    %v442 = vld [vmem:[#allocation3 + $0x10] sm:$0xf]
    %v443 = vld [vmem:[#allocation3 + $0x14] sm:$0xf]
    %v444 = vld [vmem:[#allocation3 + $0x18] sm:$0xf]
    %v445 = vld [vmem:[#allocation3 + $0x1c] sm:$0xf]
    %v446 = vld [vmem:[#allocation3 + $0x20] sm:$0xf]
    %v447 = vld [vmem:[#allocation3 + $0x24] sm:$0xf]
    %v448 = vld [vmem:[#allocation3 + $0x28] sm:$0xf]
    %v449 = vld [vmem:[#allocation3 + $0x2c] sm:$0xf]
    %v450 = vld [vmem:[#allocation3 + $0x30] sm:$0xf]
    %v451 = vld [vmem:[#allocation3 + $0x34] sm:$0xf]
    %v452 = vld [vmem:[#allocation3 + $0x38] sm:$0xf]
    %v453 = vld [vmem:[#allocation3 + $0x3c] sm:$0xf]
    %v470 = vunpack.c.l.b16 %v438
    %v471 = vunpack.c.l.b16 %v439
    %v472 = vunpack.c.l.b16 %v440
    %v473 = vunpack.c.l.b16 %v441
    %v474 = vunpack.c.l.b16 %v442
    %v475 = vunpack.c.l.b16 %v443
    %v476 = vunpack.c.l.b16 %v444
    %v477 = vunpack.c.l.b16 %v445
    %v478 = vunpack.c.l.b16 %v446
    %v479 = vunpack.c.l.b16 %v447
    %v480 = vunpack.c.l.b16 %v448
    %v481 = vunpack.c.l.b16 %v449
    %v482 = vunpack.c.l.b16 %v450
    %v483 = vunpack.c.l.b16 %v451
    %v484 = vunpack.c.l.b16 %v452
    %v485 = vunpack.c.l.b16 %v453
    %v486 = vpack.c.b16 %v471, %v470
    %v487 = vpack.c.b16 %v473, %v472
    %v488 = vpack.c.b16 %v475, %v474
    %v489 = vpack.c.b16 %v477, %v476
    %v490 = vpack.c.b16 %v479, %v478
    %v491 = vpack.c.b16 %v481, %v480
    %v492 = vpack.c.b16 %v483, %v482
    %v493 = vpack.c.b16 %v485, %v484
    %502 = vmatprep.subr.bf16.mxu0 0
    %503 = vmatpush1.bf16.msra.mxu0 %v486
    %504 = vmatprep.subr.bf16.mxu0 0
    %505 = vmatpush1.bf16.msra.mxu0 %v487
    %506 = vmatprep.subr.bf16.mxu0 0
    %507 = vmatpush1.bf16.msra.mxu0 %v488
    %508 = vmatprep.subr.bf16.mxu0 0
    %509 = vmatpush1.bf16.msra.mxu0 %v489
    %510 = vmatprep.subr.bf16.mxu0 0
    %511 = vmatpush1.bf16.msra.mxu0 %v490
    %512 = vmatprep.subr.bf16.mxu0 0
    %513 = vmatpush1.bf16.msra.mxu0 %v491
    %514 = vmatprep.subr.bf16.mxu0 0
    %515 = vmatpush1.bf16.msra.mxu0 %v492
    %516 = vmatprep.subr.bf16.mxu0 0
    %517 = vmatpush1.bf16.msra.mxu0 %v493
    %518 = vmatprep.subr.bf16.mxu0 0
    %519 = vmatpush1.bf16.msra.mxu0 0
    %520 = vmatprep.subr.bf16.mxu0 0
    %521 = vmatpush1.bf16.msra.mxu0 0
    %522 = vmatprep.subr.bf16.mxu0 0
    %523 = vmatpush1.bf16.msra.mxu0 0
    %524 = vmatprep.subr.bf16.mxu0 0
    %525 = vmatpush1.bf16.msra.mxu0 0
    %526 = vmatprep.subr.bf16.mxu0 0
    %527 = vmatpush1.bf16.msra.mxu0 0
    %528 = vmatprep.subr.bf16.mxu0 0
    %529 = vmatpush1.bf16.msra.mxu0 0
    %530 = vmatprep.subr.bf16.mxu0 0
    %531 = vmatpush1.bf16.msra.mxu0 0
    %532 = vmatprep.subr.bf16.mxu0 0
    %533 = vmatpush1.bf16.msra.mxu0 0
    %534 = vmatprep.mubr.bf16.mxu0 0
    %535 = vmatmul.mubr.bf16.gmra.mrb[0].mxu0 %v433
    %v536 = vpop.f32.mrb[0].mxu0
    %v537 = vadd.f32 0.0, %v536
    %v538 = vpop.f32.mrb[0].mxu0
    %v539 = vpop.f32.mrb[0].mxu0
    %v540 = vpop.f32.mrb[0].mxu0
    %541 = vdwg.mxu0
    %v542 = vadd.f32 %v437, %v537
    %v543 = vmul.f32 %v542, %v175
    %v544 = vxor.u32 %v543, 2147483648
    %v545 = vmul.f32 %v544, 1.442695
    %v546 = vpow.pop %v545
    %v547 = vadd.f32 %v546, 1.0
    %v548 = vrcp.pop %v547
    %v549 = vmul.f32 1.0, %v548
    %v550 = vmul.f32 %v549, 2.0
    %v551 = vsub.f32 %v550, 1.0
    %v552 = vsel %vm174, %v551, %v549
    %553 = vrot.lane.b32.xlu0 %v552, 64
    %v554 = vpop.permute.xlu0 %553
    %555 = vrot.lane.b32.xlu0 %v552, 96
    %v556 = vpop.permute.xlu0 %555
    %557 = vrot.lane.b32.xlu0 %v552, 32
    %v558 = vpop.permute.xlu0 %557
    %v559 = vmul.f32 %v556, %v430
    %v560 = vmul.f32 %v552, %v554
    %v561 = vadd.f32 %v559, %v560
    %v562 = vtanh.pop %v561
    %v563 = vmul.f32 %v558, %v562
    %v564 = vpack.c.bf16 %v563, %v563
    %s565 = scalar_lea.vmem [#allocation6], 8
    %566 = vst [vmem:[%s565] sm:$0xf] %v564
    %s567 = scalar_lea.vmem [#allocation2], 24
    %v568 = vld [vmem:[%s567] sm:$0xff]
    %v569 = vld [vmem:[#allocation3] sm:$0xf]
    %v570 = vld [vmem:[#allocation3 + $0x4] sm:$0xf]
    %v571 = vld [vmem:[#allocation3 + $0x8] sm:$0xf]
    %v572 = vld [vmem:[#allocation3 + $0xc] sm:$0xf]
    %v573 = vld [vmem:[#allocation3 + $0x10] sm:$0xf]
    %v574 = vld [vmem:[#allocation3 + $0x14] sm:$0xf]
    %v575 = vld [vmem:[#allocation3 + $0x18] sm:$0xf]
    %v576 = vld [vmem:[#allocation3 + $0x1c] sm:$0xf]
    %v577 = vld [vmem:[#allocation3 + $0x20] sm:$0xf]
    %v578 = vld [vmem:[#allocation3 + $0x24] sm:$0xf]
    %v579 = vld [vmem:[#allocation3 + $0x28] sm:$0xf]
    %v580 = vld [vmem:[#allocation3 + $0x2c] sm:$0xf]
    %v581 = vld [vmem:[#allocation3 + $0x30] sm:$0xf]
    %v582 = vld [vmem:[#allocation3 + $0x34] sm:$0xf]
    %v583 = vld [vmem:[#allocation3 + $0x38] sm:$0xf]
    %v584 = vld [vmem:[#allocation3 + $0x3c] sm:$0xf]
    %v601 = vunpack.c.l.b16 %v569
    %v602 = vunpack.c.l.b16 %v570
    %v603 = vunpack.c.l.b16 %v571
    %v604 = vunpack.c.l.b16 %v572
    %v605 = vunpack.c.l.b16 %v573
    %v606 = vunpack.c.l.b16 %v574
    %v607 = vunpack.c.l.b16 %v575
    %v608 = vunpack.c.l.b16 %v576
    %v609 = vunpack.c.l.b16 %v577
    %v610 = vunpack.c.l.b16 %v578
    %v611 = vunpack.c.l.b16 %v579
    %v612 = vunpack.c.l.b16 %v580
    %v613 = vunpack.c.l.b16 %v581
    %v614 = vunpack.c.l.b16 %v582
    %v615 = vunpack.c.l.b16 %v583
    %v616 = vunpack.c.l.b16 %v584
    %v617 = vpack.c.b16 %v602, %v601
    %v618 = vpack.c.b16 %v604, %v603
    %v619 = vpack.c.b16 %v606, %v605
    %v620 = vpack.c.b16 %v608, %v607
    %v621 = vpack.c.b16 %v610, %v609
    %v622 = vpack.c.b16 %v612, %v611
    %v623 = vpack.c.b16 %v614, %v613
    %v624 = vpack.c.b16 %v616, %v615
    %633 = vmatprep.subr.bf16.mxu0 0
    %634 = vmatpush1.bf16.msra.mxu0 %v617
    %635 = vmatprep.subr.bf16.mxu0 0
    %636 = vmatpush1.bf16.msra.mxu0 %v618
    %637 = vmatprep.subr.bf16.mxu0 0
    %638 = vmatpush1.bf16.msra.mxu0 %v619
    %639 = vmatprep.subr.bf16.mxu0 0
    %640 = vmatpush1.bf16.msra.mxu0 %v620
    %641 = vmatprep.subr.bf16.mxu0 0
    %642 = vmatpush1.bf16.msra.mxu0 %v621
    %643 = vmatprep.subr.bf16.mxu0 0
    %644 = vmatpush1.bf16.msra.mxu0 %v622
    %645 = vmatprep.subr.bf16.mxu0 0
    %646 = vmatpush1.bf16.msra.mxu0 %v623
    %647 = vmatprep.subr.bf16.mxu0 0
    %648 = vmatpush1.bf16.msra.mxu0 %v624
    %649 = vmatprep.subr.bf16.mxu0 0
    %650 = vmatpush1.bf16.msra.mxu0 0
    %651 = vmatprep.subr.bf16.mxu0 0
    %652 = vmatpush1.bf16.msra.mxu0 0
    %653 = vmatprep.subr.bf16.mxu0 0
    %654 = vmatpush1.bf16.msra.mxu0 0
    %655 = vmatprep.subr.bf16.mxu0 0
    %656 = vmatpush1.bf16.msra.mxu0 0
    %657 = vmatprep.subr.bf16.mxu0 0
    %658 = vmatpush1.bf16.msra.mxu0 0
    %659 = vmatprep.subr.bf16.mxu0 0
    %660 = vmatpush1.bf16.msra.mxu0 0
    %661 = vmatprep.subr.bf16.mxu0 0
    %662 = vmatpush1.bf16.msra.mxu0 0
    %663 = vmatprep.subr.bf16.mxu0 0
    %664 = vmatpush1.bf16.msra.mxu0 0
    %665 = vmatprep.mubr.bf16.mxu0 0
    %666 = vmatmul.mubr.bf16.gmra.mrb[0].mxu0 %v564
    %v667 = vpop.f32.mrb[0].mxu0
    %v668 = vadd.f32 0.0, %v667
    %v669 = vpop.f32.mrb[0].mxu0
    %v670 = vpop.f32.mrb[0].mxu0
    %v671 = vpop.f32.mrb[0].mxu0
    %672 = vdwg.mxu0
    %v673 = vadd.f32 %v568, %v668
    %v674 = vmul.f32 %v673, %v175
    %v675 = vxor.u32 %v674, 2147483648
    %v676 = vmul.f32 %v675, 1.442695
    %v677 = vpow.pop %v676
    %v678 = vadd.f32 %v677, 1.0
    %v679 = vrcp.pop %v678
    %v680 = vmul.f32 1.0, %v679
    %v681 = vmul.f32 %v680, 2.0
    %v682 = vsub.f32 %v681, 1.0
    %v683 = vsel %vm174, %v682, %v680
    %684 = vrot.lane.b32.xlu0 %v683, 64
    %v685 = vpop.permute.xlu0 %684
    %686 = vrot.lane.b32.xlu0 %v683, 96
    %v687 = vpop.permute.xlu0 %686
    %688 = vrot.lane.b32.xlu0 %v683, 32
    %v689 = vpop.permute.xlu0 %688
    %v690 = vmul.f32 %v687, %v561
    %v691 = vmul.f32 %v683, %v685
    %v692 = vadd.f32 %v690, %v691
    %v693 = vtanh.pop %v692
    %v694 = vmul.f32 %v689, %v693
    %v695 = vpack.c.bf16 %v694, %v694
    %s696 = scalar_lea.vmem [#allocation6], 12
    %697 = vst [vmem:[%s696] sm:$0xf] %v695
    %s698 = scalar_lea.vmem [#allocation2], 32
    %v699 = vld [vmem:[%s698] sm:$0xff]
    %v700 = vld [vmem:[#allocation3] sm:$0xf]
    %v701 = vld [vmem:[#allocation3 + $0x4] sm:$0xf]
    %v702 = vld [vmem:[#allocation3 + $0x8] sm:$0xf]
    %v703 = vld [vmem:[#allocation3 + $0xc] sm:$0xf]
    %v704 = vld [vmem:[#allocation3 + $0x10] sm:$0xf]
    %v705 = vld [vmem:[#allocation3 + $0x14] sm:$0xf]
    %v706 = vld [vmem:[#allocation3 + $0x18] sm:$0xf]
    %v707 = vld [vmem:[#allocation3 + $0x1c] sm:$0xf]
    %v708 = vld [vmem:[#allocation3 + $0x20] sm:$0xf]
    %v709 = vld [vmem:[#allocation3 + $0x24] sm:$0xf]
    %v710 = vld [vmem:[#allocation3 + $0x28] sm:$0xf]
    %v711 = vld [vmem:[#allocation3 + $0x2c] sm:$0xf]
    %v712 = vld [vmem:[#allocation3 + $0x30] sm:$0xf]
    %v713 = vld [vmem:[#allocation3 + $0x34] sm:$0xf]
    %v714 = vld [vmem:[#allocation3 + $0x38] sm:$0xf]
    %v715 = vld [vmem:[#allocation3 + $0x3c] sm:$0xf]
    %v732 = vunpack.c.l.b16 %v700
    %v733 = vunpack.c.l.b16 %v701
    %v734 = vunpack.c.l.b16 %v702
    %v735 = vunpack.c.l.b16 %v703
    %v736 = vunpack.c.l.b16 %v704
    %v737 = vunpack.c.l.b16 %v705
    %v738 = vunpack.c.l.b16 %v706
    %v739 = vunpack.c.l.b16 %v707
    %v740 = vunpack.c.l.b16 %v708
    %v741 = vunpack.c.l.b16 %v709
    %v742 = vunpack.c.l.b16 %v710
    %v743 = vunpack.c.l.b16 %v711
    %v744 = vunpack.c.l.b16 %v712
    %v745 = vunpack.c.l.b16 %v713
    %v746 = vunpack.c.l.b16 %v714
    %v747 = vunpack.c.l.b16 %v715
    %v748 = vpack.c.b16 %v733, %v732
    %v749 = vpack.c.b16 %v735, %v734
    %v750 = vpack.c.b16 %v737, %v736
    %v751 = vpack.c.b16 %v739, %v738
    %v752 = vpack.c.b16 %v741, %v740
    %v753 = vpack.c.b16 %v743, %v742
    %v754 = vpack.c.b16 %v745, %v744
    %v755 = vpack.c.b16 %v747, %v746
    %764 = vmatprep.subr.bf16.mxu0 0
    %765 = vmatpush1.bf16.msra.mxu0 %v748
    %766 = vmatprep.subr.bf16.mxu0 0
    %767 = vmatpush1.bf16.msra.mxu0 %v749
    %768 = vmatprep.subr.bf16.mxu0 0
    %769 = vmatpush1.bf16.msra.mxu0 %v750
    %770 = vmatprep.subr.bf16.mxu0 0
    %771 = vmatpush1.bf16.msra.mxu0 %v751
    %772 = vmatprep.subr.bf16.mxu0 0
    %773 = vmatpush1.bf16.msra.mxu0 %v752
    %774 = vmatprep.subr.bf16.mxu0 0
    %775 = vmatpush1.bf16.msra.mxu0 %v753
    %776 = vmatprep.subr.bf16.mxu0 0
    %777 = vmatpush1.bf16.msra.mxu0 %v754
    %778 = vmatprep.subr.bf16.mxu0 0
    %779 = vmatpush1.bf16.msra.mxu0 %v755
    %780 = vmatprep.subr.bf16.mxu0 0
    %781 = vmatpush1.bf16.msra.mxu0 0
    %782 = vmatprep.subr.bf16.mxu0 0
    %783 = vmatpush1.bf16.msra.mxu0 0
    %784 = vmatprep.subr.bf16.mxu0 0
    %785 = vmatpush1.bf16.msra.mxu0 0
    %786 = vmatprep.subr.bf16.mxu0 0
    %787 = vmatpush1.bf16.msra.mxu0 0
    %788 = vmatprep.subr.bf16.mxu0 0
    %789 = vmatpush1.bf16.msra.mxu0 0
    %790 = vmatprep.subr.bf16.mxu0 0
    %791 = vmatpush1.bf16.msra.mxu0 0
    %792 = vmatprep.subr.bf16.mxu0 0
    %793 = vmatpush1.bf16.msra.mxu0 0
    %794 = vmatprep.subr.bf16.mxu0 0
    %795 = vmatpush1.bf16.msra.mxu0 0
    %796 = vmatprep.mubr.bf16.mxu0 0
    %797 = vmatmul.mubr.bf16.gmra.mrb[0].mxu0 %v695
    %v798 = vpop.f32.mrb[0].mxu0
    %v799 = vadd.f32 0.0, %v798
    %v800 = vpop.f32.mrb[0].mxu0
    %v801 = vpop.f32.mrb[0].mxu0
    %v802 = vpop.f32.mrb[0].mxu0
    %803 = vdwg.mxu0
    %v804 = vadd.f32 %v699, %v799
    %v805 = vmul.f32 %v804, %v175
    %v806 = vxor.u32 %v805, 2147483648
    %v807 = vmul.f32 %v806, 1.442695
    %v808 = vpow.pop %v807
    %v809 = vadd.f32 %v808, 1.0
    %v810 = vrcp.pop %v809
    %v811 = vmul.f32 1.0, %v810
    %v812 = vmul.f32 %v811, 2.0
    %v813 = vsub.f32 %v812, 1.0
    %v814 = vsel %vm174, %v813, %v811
    %815 = vrot.lane.b32.xlu0 %v814, 64
    %v816 = vpop.permute.xlu0 %815
    %817 = vrot.lane.b32.xlu0 %v814, 96
    %v818 = vpop.permute.xlu0 %817
    %819 = vrot.lane.b32.xlu0 %v814, 32
    %v820 = vpop.permute.xlu0 %819
    %v821 = vmul.f32 %v818, %v692
    %v822 = vmul.f32 %v814, %v816
    %v823 = vadd.f32 %v821, %v822
    %v824 = vtanh.pop %v823
    %v825 = vmul.f32 %v820, %v824
    %v826 = vpack.c.bf16 %v825, %v825
    %s827 = scalar_lea.vmem [#allocation6], 16
    %828 = vst [vmem:[%s827] sm:$0xf] %v826
    %s829 = scalar_lea.vmem [#allocation2], 40
    %v830 = vld [vmem:[%s829] sm:$0xff]
    %v831 = vld [vmem:[#allocation3] sm:$0xf]
    %v832 = vld [vmem:[#allocation3 + $0x4] sm:$0xf]
    %v833 = vld [vmem:[#allocation3 + $0x8] sm:$0xf]
    %v834 = vld [vmem:[#allocation3 + $0xc] sm:$0xf]
    %v835 = vld [vmem:[#allocation3 + $0x10] sm:$0xf]
    %v836 = vld [vmem:[#allocation3 + $0x14] sm:$0xf]
    %v837 = vld [vmem:[#allocation3 + $0x18] sm:$0xf]
    %v838 = vld [vmem:[#allocation3 + $0x1c] sm:$0xf]
    %v839 = vld [vmem:[#allocation3 + $0x20] sm:$0xf]
    %v840 = vld [vmem:[#allocation3 + $0x24] sm:$0xf]
    %v841 = vld [vmem:[#allocation3 + $0x28] sm:$0xf]
    %v842 = vld [vmem:[#allocation3 + $0x2c] sm:$0xf]
    %v843 = vld [vmem:[#allocation3 + $0x30] sm:$0xf]
    %v844 = vld [vmem:[#allocation3 + $0x34] sm:$0xf]
    %v845 = vld [vmem:[#allocation3 + $0x38] sm:$0xf]
    %v846 = vld [vmem:[#allocation3 + $0x3c] sm:$0xf]
    %v863 = vunpack.c.l.b16 %v831
    %v864 = vunpack.c.l.b16 %v832
    %v865 = vunpack.c.l.b16 %v833
    %v866 = vunpack.c.l.b16 %v834
    %v867 = vunpack.c.l.b16 %v835
    %v868 = vunpack.c.l.b16 %v836
    %v869 = vunpack.c.l.b16 %v837
    %v870 = vunpack.c.l.b16 %v838
    %v871 = vunpack.c.l.b16 %v839
    %v872 = vunpack.c.l.b16 %v840
    %v873 = vunpack.c.l.b16 %v841
    %v874 = vunpack.c.l.b16 %v842
    %v875 = vunpack.c.l.b16 %v843
    %v876 = vunpack.c.l.b16 %v844
    %v877 = vunpack.c.l.b16 %v845
    %v878 = vunpack.c.l.b16 %v846
    %v879 = vpack.c.b16 %v864, %v863
    %v880 = vpack.c.b16 %v866, %v865
    %v881 = vpack.c.b16 %v868, %v867
    %v882 = vpack.c.b16 %v870, %v869
    %v883 = vpack.c.b16 %v872, %v871
    %v884 = vpack.c.b16 %v874, %v873
    %v885 = vpack.c.b16 %v876, %v875
    %v886 = vpack.c.b16 %v878, %v877
    %895 = vmatprep.subr.bf16.mxu0 0
    %896 = vmatpush1.bf16.msra.mxu0 %v879
    %897 = vmatprep.subr.bf16.mxu0 0
    %898 = vmatpush1.bf16.msra.mxu0 %v880
    %899 = vmatprep.subr.bf16.mxu0 0
    %900 = vmatpush1.bf16.msra.mxu0 %v881
    %901 = vmatprep.subr.bf16.mxu0 0
    %902 = vmatpush1.bf16.msra.mxu0 %v882
    %903 = vmatprep.subr.bf16.mxu0 0
    %904 = vmatpush1.bf16.msra.mxu0 %v883
    %905 = vmatprep.subr.bf16.mxu0 0
    %906 = vmatpush1.bf16.msra.mxu0 %v884
    %907 = vmatprep.subr.bf16.mxu0 0
    %908 = vmatpush1.bf16.msra.mxu0 %v885
    %909 = vmatprep.subr.bf16.mxu0 0
    %910 = vmatpush1.bf16.msra.mxu0 %v886
    %911 = vmatprep.subr.bf16.mxu0 0
    %912 = vmatpush1.bf16.msra.mxu0 0
    %913 = vmatprep.subr.bf16.mxu0 0
    %914 = vmatpush1.bf16.msra.mxu0 0
    %915 = vmatprep.subr.bf16.mxu0 0
    %916 = vmatpush1.bf16.msra.mxu0 0
    %917 = vmatprep.subr.bf16.mxu0 0
    %918 = vmatpush1.bf16.msra.mxu0 0
    %919 = vmatprep.subr.bf16.mxu0 0
    %920 = vmatpush1.bf16.msra.mxu0 0
    %921 = vmatprep.subr.bf16.mxu0 0
    %922 = vmatpush1.bf16.msra.mxu0 0
    %923 = vmatprep.subr.bf16.mxu0 0
    %924 = vmatpush1.bf16.msra.mxu0 0
    %925 = vmatprep.subr.bf16.mxu0 0
    %926 = vmatpush1.bf16.msra.mxu0 0
    %927 = vmatprep.mubr.bf16.mxu0 0
    %928 = vmatmul.mubr.bf16.gmra.mrb[0].mxu0 %v826
    %v929 = vpop.f32.mrb[0].mxu0
    %v930 = vadd.f32 0.0, %v929
    %v931 = vpop.f32.mrb[0].mxu0
    %v932 = vpop.f32.mrb[0].mxu0
    %v933 = vpop.f32.mrb[0].mxu0
    %934 = vdwg.mxu0
    %v935 = vadd.f32 %v830, %v930
    %v936 = vmul.f32 %v935, %v175
    %v937 = vxor.u32 %v936, 2147483648
    %v938 = vmul.f32 %v937, 1.442695
    %v939 = vpow.pop %v938
    %v940 = vadd.f32 %v939, 1.0
    %v941 = vrcp.pop %v940
    %v942 = vmul.f32 1.0, %v941
    %v943 = vmul.f32 %v942, 2.0
    %v944 = vsub.f32 %v943, 1.0
    %v945 = vsel %vm174, %v944, %v942
    %946 = vrot.lane.b32.xlu0 %v945, 64
    %v947 = vpop.permute.xlu0 %946
    %948 = vrot.lane.b32.xlu0 %v945, 96
    %v949 = vpop.permute.xlu0 %948
    %950 = vrot.lane.b32.xlu0 %v945, 32
    %v951 = vpop.permute.xlu0 %950
    %v952 = vmul.f32 %v949, %v823
    %v953 = vmul.f32 %v945, %v947
    %v954 = vadd.f32 %v952, %v953
    %v955 = vtanh.pop %v954
    %v956 = vmul.f32 %v951, %v955
    %v957 = vpack.c.bf16 %v956, %v956
    %s958 = scalar_lea.vmem [#allocation6], 20
    %959 = vst [vmem:[%s958] sm:$0xf] %v957
    %s960 = scalar_lea.vmem [#allocation2], 48
    %v961 = vld [vmem:[%s960] sm:$0xff]
    %v962 = vld [vmem:[#allocation3] sm:$0xf]
    %v963 = vld [vmem:[#allocation3 + $0x4] sm:$0xf]
    %v964 = vld [vmem:[#allocation3 + $0x8] sm:$0xf]
    %v965 = vld [vmem:[#allocation3 + $0xc] sm:$0xf]
    %v966 = vld [vmem:[#allocation3 + $0x10] sm:$0xf]
    %v967 = vld [vmem:[#allocation3 + $0x14] sm:$0xf]
    %v968 = vld [vmem:[#allocation3 + $0x18] sm:$0xf]
    %v969 = vld [vmem:[#allocation3 + $0x1c] sm:$0xf]
    %v970 = vld [vmem:[#allocation3 + $0x20] sm:$0xf]
    %v971 = vld [vmem:[#allocation3 + $0x24] sm:$0xf]
    %v972 = vld [vmem:[#allocation3 + $0x28] sm:$0xf]
    %v973 = vld [vmem:[#allocation3 + $0x2c] sm:$0xf]
    %v974 = vld [vmem:[#allocation3 + $0x30] sm:$0xf]
    %v975 = vld [vmem:[#allocation3 + $0x34] sm:$0xf]
    %v976 = vld [vmem:[#allocation3 + $0x38] sm:$0xf]
    %v977 = vld [vmem:[#allocation3 + $0x3c] sm:$0xf]
    %v994 = vunpack.c.l.b16 %v962
    %v995 = vunpack.c.l.b16 %v963
    %v996 = vunpack.c.l.b16 %v964
    %v997 = vunpack.c.l.b16 %v965
    %v998 = vunpack.c.l.b16 %v966
    %v999 = vunpack.c.l.b16 %v967
    %v1000 = vunpack.c.l.b16 %v968
    %v1001 = vunpack.c.l.b16 %v969
    %v1002 = vunpack.c.l.b16 %v970
    %v1003 = vunpack.c.l.b16 %v971
    %v1004 = vunpack.c.l.b16 %v972
    %v1005 = vunpack.c.l.b16 %v973
    %v1006 = vunpack.c.l.b16 %v974
    %v1007 = vunpack.c.l.b16 %v975
    %v1008 = vunpack.c.l.b16 %v976
    %v1009 = vunpack.c.l.b16 %v977
    %v1010 = vpack.c.b16 %v995, %v994
    %v1011 = vpack.c.b16 %v997, %v996
    %v1012 = vpack.c.b16 %v999, %v998
    %v1013 = vpack.c.b16 %v1001, %v1000
    %v1014 = vpack.c.b16 %v1003, %v1002
    %v1015 = vpack.c.b16 %v1005, %v1004
    %v1016 = vpack.c.b16 %v1007, %v1006
    %v1017 = vpack.c.b16 %v1009, %v1008
    %1026 = vmatprep.subr.bf16.mxu0 0
    %1027 = vmatpush1.bf16.msra.mxu0 %v1010
    %1028 = vmatprep.subr.bf16.mxu0 0
    %1029 = vmatpush1.bf16.msra.mxu0 %v1011
    %1030 = vmatprep.subr.bf16.mxu0 0
    %1031 = vmatpush1.bf16.msra.mxu0 %v1012
    %1032 = vmatprep.subr.bf16.mxu0 0
    %1033 = vmatpush1.bf16.msra.mxu0 %v1013
    %1034 = vmatprep.subr.bf16.mxu0 0
    %1035 = vmatpush1.bf16.msra.mxu0 %v1014
    %1036 = vmatprep.subr.bf16.mxu0 0
    %1037 = vmatpush1.bf16.msra.mxu0 %v1015
    %1038 = vmatprep.subr.bf16.mxu0 0
    %1039 = vmatpush1.bf16.msra.mxu0 %v1016
    %1040 = vmatprep.subr.bf16.mxu0 0
    %1041 = vmatpush1.bf16.msra.mxu0 %v1017
    %1042 = vmatprep.subr.bf16.mxu0 0
    %1043 = vmatpush1.bf16.msra.mxu0 0
    %1044 = vmatprep.subr.bf16.mxu0 0
    %1045 = vmatpush1.bf16.msra.mxu0 0
    %1046 = vmatprep.subr.bf16.mxu0 0
    %1047 = vmatpush1.bf16.msra.mxu0 0
    %1048 = vmatprep.subr.bf16.mxu0 0
    %1049 = vmatpush1.bf16.msra.mxu0 0
    %1050 = vmatprep.subr.bf16.mxu0 0
    %1051 = vmatpush1.bf16.msra.mxu0 0
    %1052 = vmatprep.subr.bf16.mxu0 0
    %1053 = vmatpush1.bf16.msra.mxu0 0
    %1054 = vmatprep.subr.bf16.mxu0 0
    %1055 = vmatpush1.bf16.msra.mxu0 0
    %1056 = vmatprep.subr.bf16.mxu0 0
    %1057 = vmatpush1.bf16.msra.mxu0 0
    %1058 = vmatprep.mubr.bf16.mxu0 0
    %1059 = vmatmul.mubr.bf16.gmra.mrb[0].mxu0 %v957
    %v1060 = vpop.f32.mrb[0].mxu0
    %v1061 = vadd.f32 0.0, %v1060
    %v1062 = vpop.f32.mrb[0].mxu0
    %v1063 = vpop.f32.mrb[0].mxu0
    %v1064 = vpop.f32.mrb[0].mxu0
    %1065 = vdwg.mxu0
    %v1066 = vadd.f32 %v961, %v1061
    %v1067 = vmul.f32 %v1066, %v175
    %v1068 = vxor.u32 %v1067, 2147483648
    %v1069 = vmul.f32 %v1068, 1.442695
    %v1070 = vpow.pop %v1069
    %v1071 = vadd.f32 %v1070, 1.0
    %v1072 = vrcp.pop %v1071
    %v1073 = vmul.f32 1.0, %v1072
    %v1074 = vmul.f32 %v1073, 2.0
    %v1075 = vsub.f32 %v1074, 1.0
    %v1076 = vsel %vm174, %v1075, %v1073
    %1077 = vrot.lane.b32.xlu0 %v1076, 64
    %v1078 = vpop.permute.xlu0 %1077
    %1079 = vrot.lane.b32.xlu0 %v1076, 96
    %v1080 = vpop.permute.xlu0 %1079
    %1081 = vrot.lane.b32.xlu0 %v1076, 32
    %v1082 = vpop.permute.xlu0 %1081
    %v1083 = vmul.f32 %v1080, %v954
    %v1084 = vmul.f32 %v1076, %v1078
    %v1085 = vadd.f32 %v1083, %v1084
    %v1086 = vtanh.pop %v1085
    %v1087 = vmul.f32 %v1082, %v1086
    %v1088 = vpack.c.bf16 %v1087, %v1087
    %s1089 = scalar_lea.vmem [#allocation6], 24
    %1090 = vst [vmem:[%s1089] sm:$0xf] %v1088
    %s1091 = scalar_lea.vmem [#allocation2], 56
    %v1092 = vld [vmem:[%s1091] sm:$0xff]
    %v1093 = vld [vmem:[#allocation3] sm:$0xf]
    %v1094 = vld [vmem:[#allocation3 + $0x4] sm:$0xf]
    %v1095 = vld [vmem:[#allocation3 + $0x8] sm:$0xf]
    %v1096 = vld [vmem:[#allocation3 + $0xc] sm:$0xf]
    %v1097 = vld [vmem:[#allocation3 + $0x10] sm:$0xf]
    %v1098 = vld [vmem:[#allocation3 + $0x14] sm:$0xf]
    %v1099 = vld [vmem:[#allocation3 + $0x18] sm:$0xf]
    %v1100 = vld [vmem:[#allocation3 + $0x1c] sm:$0xf]
    %v1101 = vld [vmem:[#allocation3 + $0x20] sm:$0xf]
    %v1102 = vld [vmem:[#allocation3 + $0x24] sm:$0xf]
    %v1103 = vld [vmem:[#allocation3 + $0x28] sm:$0xf]
    %v1104 = vld [vmem:[#allocation3 + $0x2c] sm:$0xf]
    %v1105 = vld [vmem:[#allocation3 + $0x30] sm:$0xf]
    %v1106 = vld [vmem:[#allocation3 + $0x34] sm:$0xf]
    %v1107 = vld [vmem:[#allocation3 + $0x38] sm:$0xf]
    %v1108 = vld [vmem:[#allocation3 + $0x3c] sm:$0xf]
    %v1125 = vunpack.c.l.b16 %v1093
    %v1126 = vunpack.c.l.b16 %v1094
    %v1127 = vunpack.c.l.b16 %v1095
    %v1128 = vunpack.c.l.b16 %v1096
    %v1129 = vunpack.c.l.b16 %v1097
    %v1130 = vunpack.c.l.b16 %v1098
    %v1131 = vunpack.c.l.b16 %v1099
    %v1132 = vunpack.c.l.b16 %v1100
    %v1133 = vunpack.c.l.b16 %v1101
    %v1134 = vunpack.c.l.b16 %v1102
    %v1135 = vunpack.c.l.b16 %v1103
    %v1136 = vunpack.c.l.b16 %v1104
    %v1137 = vunpack.c.l.b16 %v1105
    %v1138 = vunpack.c.l.b16 %v1106
    %v1139 = vunpack.c.l.b16 %v1107
    %v1140 = vunpack.c.l.b16 %v1108
    %v1141 = vpack.c.b16 %v1126, %v1125
    %v1142 = vpack.c.b16 %v1128, %v1127
    %v1143 = vpack.c.b16 %v1130, %v1129
    %v1144 = vpack.c.b16 %v1132, %v1131
    %v1145 = vpack.c.b16 %v1134, %v1133
    %v1146 = vpack.c.b16 %v1136, %v1135
    %v1147 = vpack.c.b16 %v1138, %v1137
    %v1148 = vpack.c.b16 %v1140, %v1139
    %1157 = vmatprep.subr.bf16.mxu0 0
    %1158 = vmatpush1.bf16.msra.mxu0 %v1141
    %1159 = vmatprep.subr.bf16.mxu0 0
    %1160 = vmatpush1.bf16.msra.mxu0 %v1142
    %1161 = vmatprep.subr.bf16.mxu0 0
    %1162 = vmatpush1.bf16.msra.mxu0 %v1143
    %1163 = vmatprep.subr.bf16.mxu0 0
    %1164 = vmatpush1.bf16.msra.mxu0 %v1144
    %1165 = vmatprep.subr.bf16.mxu0 0
    %1166 = vmatpush1.bf16.msra.mxu0 %v1145
    %1167 = vmatprep.subr.bf16.mxu0 0
    %1168 = vmatpush1.bf16.msra.mxu0 %v1146
    %1169 = vmatprep.subr.bf16.mxu0 0
    %1170 = vmatpush1.bf16.msra.mxu0 %v1147
    %1171 = vmatprep.subr.bf16.mxu0 0
    %1172 = vmatpush1.bf16.msra.mxu0 %v1148
    %1173 = vmatprep.subr.bf16.mxu0 0
    %1174 = vmatpush1.bf16.msra.mxu0 0
    %1175 = vmatprep.subr.bf16.mxu0 0
    %1176 = vmatpush1.bf16.msra.mxu0 0
    %1177 = vmatprep.subr.bf16.mxu0 0
    %1178 = vmatpush1.bf16.msra.mxu0 0
    %1179 = vmatprep.subr.bf16.mxu0 0
    %1180 = vmatpush1.bf16.msra.mxu0 0
    %1181 = vmatprep.subr.bf16.mxu0 0
    %1182 = vmatpush1.bf16.msra.mxu0 0
    %1183 = vmatprep.subr.bf16.mxu0 0
    %1184 = vmatpush1.bf16.msra.mxu0 0
    %1185 = vmatprep.subr.bf16.mxu0 0
    %1186 = vmatpush1.bf16.msra.mxu0 0
    %1187 = vmatprep.subr.bf16.mxu0 0
    %1188 = vmatpush1.bf16.msra.mxu0 0
    %1189 = vmatprep.mubr.bf16.mxu0 0
    %1190 = vmatmul.mubr.bf16.gmra.mrb[0].mxu0 %v1088
    %v1191 = vpop.f32.mrb[0].mxu0
    %v1192 = vadd.f32 0.0, %v1191
    %v1193 = vpop.f32.mrb[0].mxu0
    %v1194 = vpop.f32.mrb[0].mxu0
    %v1195 = vpop.f32.mrb[0].mxu0
    %1196 = vdwg.mxu0
    %v1197 = vadd.f32 %v1092, %v1192
    %v1198 = vmul.f32 %v1197, %v175
    %v1199 = vxor.u32 %v1198, 2147483648
    %v1200 = vmul.f32 %v1199, 1.442695
    %v1201 = vpow.pop %v1200
    %v1202 = vadd.f32 %v1201, 1.0
    %v1203 = vrcp.pop %v1202
    %v1204 = vmul.f32 1.0, %v1203
    %v1205 = vmul.f32 %v1204, 2.0
    %v1206 = vsub.f32 %v1205, 1.0
    %v1207 = vsel %vm174, %v1206, %v1204
    %1208 = vrot.lane.b32.xlu0 %v1207, 64
    %v1209 = vpop.permute.xlu0 %1208
    %1210 = vrot.lane.b32.xlu0 %v1207, 96
    %v1211 = vpop.permute.xlu0 %1210
    %1212 = vrot.lane.b32.xlu0 %v1207, 32
    %v1213 = vpop.permute.xlu0 %1212
    %v1214 = vmul.f32 %v1211, %v1085
    %v1215 = vmul.f32 %v1207, %v1209
    %v1216 = vadd.f32 %v1214, %v1215
    %v1217 = vtanh.pop %v1216
    %v1218 = vmul.f32 %v1213, %v1217
    %v1219 = vpack.c.bf16 %v1218, %v1218
    %s1220 = scalar_lea.vmem [#allocation6], 28
    %1221 = vst [vmem:[%s1220] sm:$0xf] %v1219
    // Predicated region
    $region22: #{tpu_custom_call.1} parent=1 // pred_check
      _
    $region23: #{tpu_custom_call.1} parent=1 // pred_check_branch
      %1223 = sbr.rel (0) target = $region25
    $region24: #{tpu_custom_call.1} parent=1 // pred_region
      %s1225 = ssub.s32 512, 512
      %1226 = vsyncadd [#allocation5], %s1225
      %s1227 = sshll.u32 [#allocation6], 4
      %s1228 = int_to_ptr.vmem [resolvable:$true] %s1227
      %1233 = dma.vmem_to_hbm [thread:$0]  %s1228, 512, %s4, [#allocation5], 64, 64, 4
    $region25: #{tpu_custom_call.1} parent=1 // pred_fallthru
      _
    // Predicated region
    $region26: #{tpu_custom_call.1} parent=1 // pred_check
      _
    $region27: #{tpu_custom_call.1} parent=1 // pred_check_branch
      %1235 = sbr.rel (0) target = $region29
    $region28: #{tpu_custom_call.1} parent=1 // pred_region
      %1236 = dma.done [#allocation5], 512
    $region29: #{tpu_custom_call.1} parent=1 // pred_fallthru
      _
    %1237 = vsyncpa [#allocation4], 1
    %1238 = vsyncpa [#allocation5], 1

</llo_original>
